<compile_context>
chip_gen: v6e
topology: v6e:2x2x1
jax: 0.10.0
libtpu: 0.0.40
codegen_flags: <defaults>
</compile_context>

<pallas_src>
import jax
import jax.numpy as jnp
from jax import lax
from jax.experimental import pallas as pl
from jax.experimental.pallas import tpu as pltpu

INPUT = 1
H = 64          # real hidden size
HP = 128        # lane-padded hidden size (vreg aligned)
GP = 4 * HP     # padded gate width
FC1 = 32


def _lstm_head_kernel(xg_ref,     # (T, Bt, GP)  precomputed x-gates (pre-scaled, bias folded in)
                      whh_ref,    # (HP, GP)     padded, pre-scaled W_hh^T
                      scale_ref,  # (1, GP)      post-tanh per-lane scale
                      offs_ref,   # (1, GP)      post-tanh per-lane offset
                      whead_ref,  # (1, HP)      fused fc2(fc1(.)) weight row
                      bhead_ref,  # (1, Bt)      fused head bias (lane-broadcast)
                      out_ref,    # (1, Bt)      lane-dense output row
                      h_scr,      # VMEM (Bt, HP) f32
                      c_scr):     # VMEM (Bt, HP) f32
    T = xg_ref.shape[0]

    h_scr[...] = jnp.zeros_like(h_scr)
    c_scr[...] = jnp.zeros_like(c_scr)

    # loop-invariant loads hoisted out of the recurrence
    whh = whh_ref[...]
    scale = scale_ref[...]
    offs = offs_ref[...]

    def step(t, carry):
        # gates pre-activation: hoisted input part + recurrent matmul (Bt, GP)
        pre = xg_ref[t] + jnp.dot(h_scr[...], whh,
                                  preferred_element_type=jnp.float32)
        tg = jnp.tanh(pre)                  # one full-width EUP pass
        g = scale * tg + offs               # sigmoid on i/f/o lanes, tanh on g lanes, 0 on pads
        i_g = g[:, 0 * HP:1 * HP]           # 128-lane aligned slices
        f_g = g[:, 1 * HP:2 * HP]
        g_g = g[:, 2 * HP:3 * HP]
        o_g = g[:, 3 * HP:4 * HP]
        c_new = f_g * c_scr[...] + i_g * g_g
        h_scr[...] = o_g * jnp.tanh(c_new)
        c_scr[...] = c_new
        return carry

    lax.fori_loop(0, T, step, 0, unroll=True)   # T static & short -> full unroll

    # fused head: out = h_last @ w_head + b_head, written lane-dense as (1, Bt)
    h_last = h_scr[...]                          # padded lanes are exactly 0
    out = jnp.dot(whead_ref[...], h_last.T,
                  preferred_element_type=jnp.float32) + bhead_ref[...]
    out_ref[...] = out.astype(out_ref.dtype)


def _round_up(n, m):
    return -(-n // m) * m


@jax.jit
def lstm_model_forward(x, params):
    """x: (B, T, 1) float32 (PyTorch batch_first layout). Returns (B, 1)."""
    B, T, _ = x.shape

    # ---- gate prep. PyTorch gate order (i, f, g, o). tanh-only trick: pre-scale i/f/o by 0.5.
    whh_t = params["w_hh"].T.astype(jnp.float32)                  # (H, 4H)
    wih = params["w_ih"].astype(jnp.float32)[:, 0]                # (4H,)   (input_size == 1)
    bias = (params["b_ih"] + params["b_hh"]).astype(jnp.float32)  # (4H,)

    whh_p = jnp.zeros((HP, GP), jnp.float32)
    wih_p = jnp.zeros((GP,), jnp.float32)
    b_p = jnp.zeros((GP,), jnp.float32)
    scale_v = jnp.zeros((GP,), jnp.float32)
    offs_v = jnp.zeros((GP,), jnp.float32)
    for gi in range(4):
        pre_s = 1.0 if gi == 2 else 0.5     # g gate stays tanh; i/f/o become 0.5*tanh(z/2)+0.5
        post_s = 1.0 if gi == 2 else 0.5
        post_o = 0.0 if gi == 2 else 0.5
        src = slice(gi * H, (gi + 1) * H)
        dst = slice(gi * HP, gi * HP + H)
        whh_p = whh_p.at[:H, dst].set(whh_t[:, src] * pre_s)
        wih_p = wih_p.at[dst].set(wih[src] * pre_s)
        b_p = b_p.at[dst].set(bias[src] * pre_s)
        scale_v = scale_v.at[dst].set(post_s)
        offs_v = offs_v.at[dst].set(post_o)
    scale_v = scale_v.reshape(1, GP)
    offs_v = offs_v.reshape(1, GP)

    # ---- fused head: fc2(fc1(h)) = h @ (W1^T W2^T) + (b1 W2^T + b2)   (dropout = identity, eval)
    w_head = params["w_fc1"].T @ params["w_fc2"].T                     # (H, 1)
    b_head = (params["b_fc1"] @ params["w_fc2"].T + params["b_fc2"])   # (1,)
    whead_row = jnp.zeros((1, HP), jnp.float32).at[0, :H].set(w_head[:, 0])

    # ---- batch pad / tile: >= 8 sublanes; 256-row tiles for large batches (MXU-width rows)
    b_pad = max(8, _round_up(B, 8))
    if b_pad > 256:
        b_tile = 256
        b_pad = _round_up(b_pad, b_tile)
    else:
        b_tile = b_pad
    xb = x.astype(jnp.float32)
    if b_pad != B:
        xb = jnp.pad(xb, ((0, b_pad - B), (0, 0), (0, 0)))

    bhead_row = jnp.full((1, b_pad), b_head[0], jnp.float32)

    # ---- hoisted input projection (one vectorized pass): xg[t,b,:] = x[b,t,0]*W_ih_s + bias_s
    xg = (jnp.transpose(xb, (1, 0, 2)) * wih_p.reshape(1, 1, GP)
          + b_p.reshape(1, 1, GP))                                     # (T, b_pad, GP)

    num_tiles = b_pad // b_tile
    out_row = pl.pallas_call(
        _lstm_head_kernel,
        out_shape=jax.ShapeDtypeStruct((1, b_pad), jnp.float32),
        grid_spec=pltpu.PrefetchScalarGridSpec(
            num_scalar_prefetch=0,
            grid=(num_tiles,),
            in_specs=[
                pl.BlockSpec((T, b_tile, GP), lambda b: (0, b, 0)),   # x-gates, tiled over batch
                pl.BlockSpec((HP, GP), lambda b: (0, 0)),             # W_hh^T (padded, scaled)
                pl.BlockSpec((1, GP), lambda b: (0, 0)),              # post-tanh scale
                pl.BlockSpec((1, GP), lambda b: (0, 0)),              # post-tanh offset
                pl.BlockSpec((1, HP), lambda b: (0, 0)),              # fused head weight
                pl.BlockSpec((1, b_tile), lambda b: (0, b)),          # fused head bias row
            ],
            out_specs=pl.BlockSpec((1, b_tile), lambda b: (0, b)),
            scratch_shapes=[pltpu.VMEM((b_tile, HP), jnp.float32),    # h
                            pltpu.VMEM((b_tile, HP), jnp.float32)],   # c
        ),
        compiler_params=pltpu.CompilerParams(
            dimension_semantics=("parallel",)),
    )(xg, whh_p, scale_v, offs_v, whead_row, bhead_row)

    return out_row[0, :B].reshape(B, 1)


def init_params(key):
    """Deterministic parameter init mirroring PyTorch's shapes (U(-k, k), k=1/sqrt(H))."""
    ks = jax.random.split(key, 8)
    k_lstm = 1.0 / jnp.sqrt(jnp.float32(H))
    k_fc1 = 1.0 / jnp.sqrt(jnp.float32(H))
    k_fc2 = 1.0 / jnp.sqrt(jnp.float32(FC1))
    u = lambda k, shape, s: jax.random.uniform(k, shape, jnp.float32, -s, s)
    return dict(
        w_ih=u(ks[0], (4 * H, INPUT), k_lstm),
        w_hh=u(ks[1], (4 * H, H), k_lstm),
        b_ih=u(ks[2], (4 * H,), k_lstm),
        b_hh=u(ks[3], (4 * H,), k_lstm),
        w_fc1=u(ks[4], (FC1, H), k_fc1),
        b_fc1=u(ks[5], (FC1,), k_fc1),
        w_fc2=u(ks[6], (1, FC1), k_fc2),
        b_fc2=u(ks[7], (1,), k_fc2),
    )


def lstm_model_ref(x, params):
    """Pure-JAX reference of the PyTorch forward (eval mode)."""
    B, T, _ = x.shape

    def cell(carry, xt):
        h, c = carry
        gates = xt @ params["w_ih"].T + h @ params["w_hh"].T + params["b_ih"] + params["b_hh"]
        i_g = jax.nn.sigmoid(gates[:, 0 * H:1 * H])
        f_g = jax.nn.sigmoid(gates[:, 1 * H:2 * H])
        g_g = jnp.tanh(gates[:, 2 * H:3 * H])
        o_g = jax.nn.sigmoid(gates[:, 3 * H:4 * H])
        c = f_g * c + i_g * g_g
        h = o_g * jnp.tanh(c)
        return (h, c), h

    h0 = jnp.zeros((B, H), jnp.float32)
    (h_last, _), _ = lax.scan(cell, (h0, h0), jnp.transpose(x, (1, 0, 2)))
    z1 = h_last @ params["w_fc1"].T + params["b_fc1"]
    return z1 @ params["w_fc2"].T + params["b_fc2"]


if __name__ == "__main__":
    key = jax.random.PRNGKey(0)
    k_x, k_p = jax.random.split(key)
    B, T = 2, 8
    x = jax.random.normal(k_x, (B, T, INPUT), jnp.float32)
    params = init_params(k_p)

    out = jax.block_until_ready(lstm_model_forward(x, params))
    ref = lstm_model_ref(x, params)

    assert out.shape == (B, 1)
    assert jnp.allclose(out, ref, atol=2e-2, rtol=2e-2), (out, ref)
    print("KERNEL_OK")
</pallas_src>

<mosaic_0001>
module attributes {stable_mosaic.version = 11 : i64} {
  func.func @_lstm_head_kernel(%arg0: i32, %arg1: memref<8x8x512xf32, #tpu.memory_space<vmem>>, %arg2: memref<128x512xf32, #tpu.memory_space<vmem>>, %arg3: memref<1x512xf32, #tpu.memory_space<vmem>>, %arg4: memref<1x512xf32, #tpu.memory_space<vmem>>, %arg5: memref<1x128xf32, #tpu.memory_space<vmem>>, %arg6: memref<1x8xf32, #tpu.memory_space<vmem>>, %arg7: memref<1x8xf32, #tpu.memory_space<vmem>>, %arg8: memref<8x128xf32, #tpu.memory_space<vmem>>, %arg9: memref<8x128xf32, #tpu.memory_space<vmem>>) attributes {dimension_semantics = [#tpu.dimension_semantics<parallel>], iteration_bounds = array<i64: 1>, scalar_prefetch = 0 : i64, scratch_operands = 2 : i64, tpu.core_type = #tpu.core_type<tc>, window_params = [{transform_indices = @transform_0, window_bounds = array<i64: 8, 8, 512>}, {pipeline_mode = #tpu.pipeline_mode<synchronous>, transform_indices = @transform_1, window_bounds = array<i64: 128, 512>}, {pipeline_mode = #tpu.pipeline_mode<synchronous>, transform_indices = @transform_2, window_bounds = array<i64: 1, 512>}, {pipeline_mode = #tpu.pipeline_mode<synchronous>, transform_indices = @transform_3, window_bounds = array<i64: 1, 512>}, {pipeline_mode = #tpu.pipeline_mode<synchronous>, transform_indices = @transform_4, window_bounds = array<i64: 1, 128>}, {transform_indices = @transform_5, window_bounds = array<i64: 1, 8>}, {transform_indices = @transform_6, window_bounds = array<i64: 1, 8>}]} {
    %cst = arith.constant 0.000000e+00 : f32
    %0 = vector.broadcast %cst : f32 to vector<8x128xf32>
    %c0 = arith.constant 0 : index
    %c0_0 = arith.constant 0 : index
    %1 = vector.load %arg8[%c0, %c0_0] : memref<8x128xf32, #tpu.memory_space<vmem>>, vector<8x128xf32>
    tpu.vector_store %arg8[%c0, %c0_0], %0 {strides = array<i32>} : memref<8x128xf32, #tpu.memory_space<vmem>>, vector<8x128xf32>,
    %cst_1 = arith.constant 0.000000e+00 : f32
    %2 = vector.broadcast %cst_1 : f32 to vector<8x128xf32>
    %c0_2 = arith.constant 0 : index
    %c0_3 = arith.constant 0 : index
    %3 = vector.load %arg9[%c0_2, %c0_3] : memref<8x128xf32, #tpu.memory_space<vmem>>, vector<8x128xf32>
    tpu.vector_store %arg9[%c0_2, %c0_3], %2 {strides = array<i32>} : memref<8x128xf32, #tpu.memory_space<vmem>>, vector<8x128xf32>,
    %c0_4 = arith.constant 0 : index
    %c0_5 = arith.constant 0 : index
    %4 = vector.load %arg2[%c0_4, %c0_5] : memref<128x512xf32, #tpu.memory_space<vmem>>, vector<128x512xf32>
    %c0_6 = arith.constant 0 : index
    %c0_7 = arith.constant 0 : index
    %5 = vector.load %arg3[%c0_6, %c0_7] : memref<1x512xf32, #tpu.memory_space<vmem>>, vector<1x512xf32>
    %c0_8 = arith.constant 0 : index
    %c0_9 = arith.constant 0 : index
    %6 = vector.load %arg4[%c0_8, %c0_9] : memref<1x512xf32, #tpu.memory_space<vmem>>, vector<1x512xf32>
    %c0_i32 = arith.constant 0 : i32
    %7 = arith.index_cast %c0_i32 : i32 to index
    %c0_10 = arith.constant 0 : index
    %c0_11 = arith.constant 0 : index
    %8 = vector.load %arg1[%7, %c0_10, %c0_11] : memref<8x8x512xf32, #tpu.memory_space<vmem>>, vector<1x8x512xf32>
    %9 = vector.shape_cast %8 : vector<1x8x512xf32> to vector<8x512xf32>
    %c0_12 = arith.constant 0 : index
    %c0_13 = arith.constant 0 : index
    %10 = vector.load %arg8[%c0_12, %c0_13] : memref<8x128xf32, #tpu.memory_space<vmem>>, vector<8x128xf32>
    %cst_14 = arith.constant dense<0.000000e+00> : vector<8x512xf32>
    %11 = tpu.matmul %10, %4, %cst_14 {dimension_numbers = #tpu.dot_dimension_numbers<[1], [0], [0], [1], [0, 0, 1, 1], [], []>} : vector<8x128xf32>, vector<128x512xf32>, vector<8x512xf32> -> vector<8x512xf32>
    %12 = arith.addf %9, %11 : vector<8x512xf32>
    %13 = math.tanh %12 : vector<8x512xf32>
    %14 = vector.broadcast %5 : vector<1x512xf32> to vector<8x512xf32>
    %15 = arith.mulf %14, %13 : vector<8x512xf32>
    %16 = vector.broadcast %6 : vector<1x512xf32> to vector<8x512xf32>
    %17 = arith.addf %15, %16 : vector<8x512xf32>
    %18 = vector.extract_strided_slice %17 {offsets = [0, 0], sizes = [8, 128], strides = [1, 1]} : vector<8x512xf32> to vector<8x128xf32>
    %19 = vector.extract_strided_slice %17 {offsets = [0, 128], sizes = [8, 128], strides = [1, 1]} : vector<8x512xf32> to vector<8x128xf32>
    %20 = vector.extract_strided_slice %17 {offsets = [0, 256], sizes = [8, 128], strides = [1, 1]} : vector<8x512xf32> to vector<8x128xf32>
    %21 = vector.extract_strided_slice %17 {offsets = [0, 384], sizes = [8, 128], strides = [1, 1]} : vector<8x512xf32> to vector<8x128xf32>
    %c0_15 = arith.constant 0 : index
    %c0_16 = arith.constant 0 : index
    %22 = vector.load %arg9[%c0_15, %c0_16] : memref<8x128xf32, #tpu.memory_space<vmem>>, vector<8x128xf32>
    %23 = arith.mulf %19, %22 : vector<8x128xf32>
    %24 = arith.mulf %18, %20 : vector<8x128xf32>
    %25 = arith.addf %23, %24 : vector<8x128xf32>
    %26 = math.tanh %25 : vector<8x128xf32>
    %27 = arith.mulf %21, %26 : vector<8x128xf32>
    %c0_17 = arith.constant 0 : index
    %c0_18 = arith.constant 0 : index
    %28 = vector.load %arg8[%c0_17, %c0_18] : memref<8x128xf32, #tpu.memory_space<vmem>>, vector<8x128xf32>
    tpu.vector_store %arg8[%c0_17, %c0_18], %27 {strides = array<i32>} : memref<8x128xf32, #tpu.memory_space<vmem>>, vector<8x128xf32>,
    %c0_19 = arith.constant 0 : index
    %c0_20 = arith.constant 0 : index
    %29 = vector.load %arg9[%c0_19, %c0_20] : memref<8x128xf32, #tpu.memory_space<vmem>>, vector<8x128xf32>
    tpu.vector_store %arg9[%c0_19, %c0_20], %25 {strides = array<i32>} : memref<8x128xf32, #tpu.memory_space<vmem>>, vector<8x128xf32>,
    %c1_i32 = arith.constant 1 : i32
    %30 = arith.index_cast %c1_i32 : i32 to index
    %c0_21 = arith.constant 0 : index
    %c0_22 = arith.constant 0 : index
    %31 = vector.load %arg1[%30, %c0_21, %c0_22] : memref<8x8x512xf32, #tpu.memory_space<vmem>>, vector<1x8x512xf32>
    %32 = vector.shape_cast %31 : vector<1x8x512xf32> to vector<8x512xf32>
    %c0_23 = arith.constant 0 : index
    %c0_24 = arith.constant 0 : index
    %33 = vector.load %arg8[%c0_23, %c0_24] : memref<8x128xf32, #tpu.memory_space<vmem>>, vector<8x128xf32>
    %cst_25 = arith.constant dense<0.000000e+00> : vector<8x512xf32>
    %34 = tpu.matmul %33, %4, %cst_25 {dimension_numbers = #tpu.dot_dimension_numbers<[1], [0], [0], [1], [0, 0, 1, 1], [], []>} : vector<8x128xf32>, vector<128x512xf32>, vector<8x512xf32> -> vector<8x512xf32>
    %35 = arith.addf %32, %34 : vector<8x512xf32>
    %36 = math.tanh %35 : vector<8x512xf32>
    %37 = vector.broadcast %5 : vector<1x512xf32> to vector<8x512xf32>
    %38 = arith.mulf %37, %36 : vector<8x512xf32>
    %39 = vector.broadcast %6 : vector<1x512xf32> to vector<8x512xf32>
    %40 = arith.addf %38, %39 : vector<8x512xf32>
    %41 = vector.extract_strided_slice %40 {offsets = [0, 0], sizes = [8, 128], strides = [1, 1]} : vector<8x512xf32> to vector<8x128xf32>
    %42 = vector.extract_strided_slice %40 {offsets = [0, 128], sizes = [8, 128], strides = [1, 1]} : vector<8x512xf32> to vector<8x128xf32>
    %43 = vector.extract_strided_slice %40 {offsets = [0, 256], sizes = [8, 128], strides = [1, 1]} : vector<8x512xf32> to vector<8x128xf32>
    %44 = vector.extract_strided_slice %40 {offsets = [0, 384], sizes = [8, 128], strides = [1, 1]} : vector<8x512xf32> to vector<8x128xf32>
    %c0_26 = arith.constant 0 : index
    %c0_27 = arith.constant 0 : index
    %45 = vector.load %arg9[%c0_26, %c0_27] : memref<8x128xf32, #tpu.memory_space<vmem>>, vector<8x128xf32>
    %46 = arith.mulf %42, %45 : vector<8x128xf32>
    %47 = arith.mulf %41, %43 : vector<8x128xf32>
    %48 = arith.addf %46, %47 : vector<8x128xf32>
    %49 = math.tanh %48 : vector<8x128xf32>
    %50 = arith.mulf %44, %49 : vector<8x128xf32>
    %c0_28 = arith.constant 0 : index
    %c0_29 = arith.constant 0 : index
    %51 = vector.load %arg8[%c0_28, %c0_29] : memref<8x128xf32, #tpu.memory_space<vmem>>, vector<8x128xf32>
    tpu.vector_store %arg8[%c0_28, %c0_29], %50 {strides = array<i32>} : memref<8x128xf32, #tpu.memory_space<vmem>>, vector<8x128xf32>,
    %c0_30 = arith.constant 0 : index
    %c0_31 = arith.constant 0 : index
    %52 = vector.load %arg9[%c0_30, %c0_31] : memref<8x128xf32, #tpu.memory_space<vmem>>, vector<8x128xf32>
    tpu.vector_store %arg9[%c0_30, %c0_31], %48 {strides = array<i32>} : memref<8x128xf32, #tpu.memory_space<vmem>>, vector<8x128xf32>,
    %c2_i32 = arith.constant 2 : i32
    %53 = arith.index_cast %c2_i32 : i32 to index
    %c0_32 = arith.constant 0 : index
    %c0_33 = arith.constant 0 : index
    %54 = vector.load %arg1[%53, %c0_32, %c0_33] : memref<8x8x512xf32, #tpu.memory_space<vmem>>, vector<1x8x512xf32>
    %55 = vector.shape_cast %54 : vector<1x8x512xf32> to vector<8x512xf32>
    %c0_34 = arith.constant 0 : index
    %c0_35 = arith.constant 0 : index
    %56 = vector.load %arg8[%c0_34, %c0_35] : memref<8x128xf32, #tpu.memory_space<vmem>>, vector<8x128xf32>
    %cst_36 = arith.constant dense<0.000000e+00> : vector<8x512xf32>
    %57 = tpu.matmul %56, %4, %cst_36 {dimension_numbers = #tpu.dot_dimension_numbers<[1], [0], [0], [1], [0, 0, 1, 1], [], []>} : vector<8x128xf32>, vector<128x512xf32>, vector<8x512xf32> -> vector<8x512xf32>
    %58 = arith.addf %55, %57 : vector<8x512xf32>
    %59 = math.tanh %58 : vector<8x512xf32>
    %60 = vector.broadcast %5 : vector<1x512xf32> to vector<8x512xf32>
    %61 = arith.mulf %60, %59 : vector<8x512xf32>
    %62 = vector.broadcast %6 : vector<1x512xf32> to vector<8x512xf32>
    %63 = arith.addf %61, %62 : vector<8x512xf32>
    %64 = vector.extract_strided_slice %63 {offsets = [0, 0], sizes = [8, 128], strides = [1, 1]} : vector<8x512xf32> to vector<8x128xf32>
    %65 = vector.extract_strided_slice %63 {offsets = [0, 128], sizes = [8, 128], strides = [1, 1]} : vector<8x512xf32> to vector<8x128xf32>
    %66 = vector.extract_strided_slice %63 {offsets = [0, 256], sizes = [8, 128], strides = [1, 1]} : vector<8x512xf32> to vector<8x128xf32>
    %67 = vector.extract_strided_slice %63 {offsets = [0, 384], sizes = [8, 128], strides = [1, 1]} : vector<8x512xf32> to vector<8x128xf32>
    %c0_37 = arith.constant 0 : index
    %c0_38 = arith.constant 0 : index
    %68 = vector.load %arg9[%c0_37, %c0_38] : memref<8x128xf32, #tpu.memory_space<vmem>>, vector<8x128xf32>
    %69 = arith.mulf %65, %68 : vector<8x128xf32>
    %70 = arith.mulf %64, %66 : vector<8x128xf32>
    %71 = arith.addf %69, %70 : vector<8x128xf32>
    %72 = math.tanh %71 : vector<8x128xf32>
    %73 = arith.mulf %67, %72 : vector<8x128xf32>
    %c0_39 = arith.constant 0 : index
    %c0_40 = arith.constant 0 : index
    %74 = vector.load %arg8[%c0_39, %c0_40] : memref<8x128xf32, #tpu.memory_space<vmem>>, vector<8x128xf32>
    tpu.vector_store %arg8[%c0_39, %c0_40], %73 {strides = array<i32>} : memref<8x128xf32, #tpu.memory_space<vmem>>, vector<8x128xf32>,
    %c0_41 = arith.constant 0 : index
    %c0_42 = arith.constant 0 : index
    %75 = vector.load %arg9[%c0_41, %c0_42] : memref<8x128xf32, #tpu.memory_space<vmem>>, vector<8x128xf32>
    tpu.vector_store %arg9[%c0_41, %c0_42], %71 {strides = array<i32>} : memref<8x128xf32, #tpu.memory_space<vmem>>, vector<8x128xf32>,
    %c3_i32 = arith.constant 3 : i32
    %76 = arith.index_cast %c3_i32 : i32 to index
    %c0_43 = arith.constant 0 : index
    %c0_44 = arith.constant 0 : index
    %77 = vector.load %arg1[%76, %c0_43, %c0_44] : memref<8x8x512xf32, #tpu.memory_space<vmem>>, vector<1x8x512xf32>
    %78 = vector.shape_cast %77 : vector<1x8x512xf32> to vector<8x512xf32>
    %c0_45 = arith.constant 0 : index
    %c0_46 = arith.constant 0 : index
    %79 = vector.load %arg8[%c0_45, %c0_46] : memref<8x128xf32, #tpu.memory_space<vmem>>, vector<8x128xf32>
    %cst_47 = arith.constant dense<0.000000e+00> : vector<8x512xf32>
    %80 = tpu.matmul %79, %4, %cst_47 {dimension_numbers = #tpu.dot_dimension_numbers<[1], [0], [0], [1], [0, 0, 1, 1], [], []>} : vector<8x128xf32>, vector<128x512xf32>, vector<8x512xf32> -> vector<8x512xf32>
    %81 = arith.addf %78, %80 : vector<8x512xf32>
    %82 = math.tanh %81 : vector<8x512xf32>
    %83 = vector.broadcast %5 : vector<1x512xf32> to vector<8x512xf32>
    %84 = arith.mulf %83, %82 : vector<8x512xf32>
    %85 = vector.broadcast %6 : vector<1x512xf32> to vector<8x512xf32>
    %86 = arith.addf %84, %85 : vector<8x512xf32>
    %87 = vector.extract_strided_slice %86 {offsets = [0, 0], sizes = [8, 128], strides = [1, 1]} : vector<8x512xf32> to vector<8x128xf32>
    %88 = vector.extract_strided_slice %86 {offsets = [0, 128], sizes = [8, 128], strides = [1, 1]} : vector<8x512xf32> to vector<8x128xf32>
    %89 = vector.extract_strided_slice %86 {offsets = [0, 256], sizes = [8, 128], strides = [1, 1]} : vector<8x512xf32> to vector<8x128xf32>
    %90 = vector.extract_strided_slice %86 {offsets = [0, 384], sizes = [8, 128], strides = [1, 1]} : vector<8x512xf32> to vector<8x128xf32>
    %c0_48 = arith.constant 0 : index
    %c0_49 = arith.constant 0 : index
    %91 = vector.load %arg9[%c0_48, %c0_49] : memref<8x128xf32, #tpu.memory_space<vmem>>, vector<8x128xf32>
    %92 = arith.mulf %88, %91 : vector<8x128xf32>
    %93 = arith.mulf %87, %89 : vector<8x128xf32>
    %94 = arith.addf %92, %93 : vector<8x128xf32>
    %95 = math.tanh %94 : vector<8x128xf32>
    %96 = arith.mulf %90, %95 : vector<8x128xf32>
    %c0_50 = arith.constant 0 : index
    %c0_51 = arith.constant 0 : index
    %97 = vector.load %arg8[%c0_50, %c0_51] : memref<8x128xf32, #tpu.memory_space<vmem>>, vector<8x128xf32>
    tpu.vector_store %arg8[%c0_50, %c0_51], %96 {strides = array<i32>} : memref<8x128xf32, #tpu.memory_space<vmem>>, vector<8x128xf32>,
    %c0_52 = arith.constant 0 : index
    %c0_53 = arith.constant 0 : index
    %98 = vector.load %arg9[%c0_52, %c0_53] : memref<8x128xf32, #tpu.memory_space<vmem>>, vector<8x128xf32>
    tpu.vector_store %arg9[%c0_52, %c0_53], %94 {strides = array<i32>} : memref<8x128xf32, #tpu.memory_space<vmem>>, vector<8x128xf32>,
    %c4_i32 = arith.constant 4 : i32
    %99 = arith.index_cast %c4_i32 : i32 to index
    %c0_54 = arith.constant 0 : index
    %c0_55 = arith.constant 0 : index
    %100 = vector.load %arg1[%99, %c0_54, %c0_55] : memref<8x8x512xf32, #tpu.memory_space<vmem>>, vector<1x8x512xf32>
    %101 = vector.shape_cast %100 : vector<1x8x512xf32> to vector<8x512xf32>
    %c0_56 = arith.constant 0 : index
    %c0_57 = arith.constant 0 : index
    %102 = vector.load %arg8[%c0_56, %c0_57] : memref<8x128xf32, #tpu.memory_space<vmem>>, vector<8x128xf32>
    %cst_58 = arith.constant dense<0.000000e+00> : vector<8x512xf32>
    %103 = tpu.matmul %102, %4, %cst_58 {dimension_numbers = #tpu.dot_dimension_numbers<[1], [0], [0], [1], [0, 0, 1, 1], [], []>} : vector<8x128xf32>, vector<128x512xf32>, vector<8x512xf32> -> vector<8x512xf32>
    %104 = arith.addf %101, %103 : vector<8x512xf32>
    %105 = math.tanh %104 : vector<8x512xf32>
    %106 = vector.broadcast %5 : vector<1x512xf32> to vector<8x512xf32>
    %107 = arith.mulf %106, %105 : vector<8x512xf32>
    %108 = vector.broadcast %6 : vector<1x512xf32> to vector<8x512xf32>
    %109 = arith.addf %107, %108 : vector<8x512xf32>
    %110 = vector.extract_strided_slice %109 {offsets = [0, 0], sizes = [8, 128], strides = [1, 1]} : vector<8x512xf32> to vector<8x128xf32>
    %111 = vector.extract_strided_slice %109 {offsets = [0, 128], sizes = [8, 128], strides = [1, 1]} : vector<8x512xf32> to vector<8x128xf32>
    %112 = vector.extract_strided_slice %109 {offsets = [0, 256], sizes = [8, 128], strides = [1, 1]} : vector<8x512xf32> to vector<8x128xf32>
    %113 = vector.extract_strided_slice %109 {offsets = [0, 384], sizes = [8, 128], strides = [1, 1]} : vector<8x512xf32> to vector<8x128xf32>
    %c0_59 = arith.constant 0 : index
    %c0_60 = arith.constant 0 : index
    %114 = vector.load %arg9[%c0_59, %c0_60] : memref<8x128xf32, #tpu.memory_space<vmem>>, vector<8x128xf32>
    %115 = arith.mulf %111, %114 : vector<8x128xf32>
    %116 = arith.mulf %110, %112 : vector<8x128xf32>
    %117 = arith.addf %115, %116 : vector<8x128xf32>
    %118 = math.tanh %117 : vector<8x128xf32>
    %119 = arith.mulf %113, %118 : vector<8x128xf32>
    %c0_61 = arith.constant 0 : index
    %c0_62 = arith.constant 0 : index
    %120 = vector.load %arg8[%c0_61, %c0_62] : memref<8x128xf32, #tpu.memory_space<vmem>>, vector<8x128xf32>
    tpu.vector_store %arg8[%c0_61, %c0_62], %119 {strides = array<i32>} : memref<8x128xf32, #tpu.memory_space<vmem>>, vector<8x128xf32>,
    %c0_63 = arith.constant 0 : index
    %c0_64 = arith.constant 0 : index
    %121 = vector.load %arg9[%c0_63, %c0_64] : memref<8x128xf32, #tpu.memory_space<vmem>>, vector<8x128xf32>
    tpu.vector_store %arg9[%c0_63, %c0_64], %117 {strides = array<i32>} : memref<8x128xf32, #tpu.memory_space<vmem>>, vector<8x128xf32>,
    %c5_i32 = arith.constant 5 : i32
    %122 = arith.index_cast %c5_i32 : i32 to index
    %c0_65 = arith.constant 0 : index
    %c0_66 = arith.constant 0 : index
    %123 = vector.load %arg1[%122, %c0_65, %c0_66] : memref<8x8x512xf32, #tpu.memory_space<vmem>>, vector<1x8x512xf32>
    %124 = vector.shape_cast %123 : vector<1x8x512xf32> to vector<8x512xf32>
    %c0_67 = arith.constant 0 : index
    %c0_68 = arith.constant 0 : index
    %125 = vector.load %arg8[%c0_67, %c0_68] : memref<8x128xf32, #tpu.memory_space<vmem>>, vector<8x128xf32>
    %cst_69 = arith.constant dense<0.000000e+00> : vector<8x512xf32>
    %126 = tpu.matmul %125, %4, %cst_69 {dimension_numbers = #tpu.dot_dimension_numbers<[1], [0], [0], [1], [0, 0, 1, 1], [], []>} : vector<8x128xf32>, vector<128x512xf32>, vector<8x512xf32> -> vector<8x512xf32>
    %127 = arith.addf %124, %126 : vector<8x512xf32>
    %128 = math.tanh %127 : vector<8x512xf32>
    %129 = vector.broadcast %5 : vector<1x512xf32> to vector<8x512xf32>
    %130 = arith.mulf %129, %128 : vector<8x512xf32>
    %131 = vector.broadcast %6 : vector<1x512xf32> to vector<8x512xf32>
    %132 = arith.addf %130, %131 : vector<8x512xf32>
    %133 = vector.extract_strided_slice %132 {offsets = [0, 0], sizes = [8, 128], strides = [1, 1]} : vector<8x512xf32> to vector<8x128xf32>
    %134 = vector.extract_strided_slice %132 {offsets = [0, 128], sizes = [8, 128], strides = [1, 1]} : vector<8x512xf32> to vector<8x128xf32>
    %135 = vector.extract_strided_slice %132 {offsets = [0, 256], sizes = [8, 128], strides = [1, 1]} : vector<8x512xf32> to vector<8x128xf32>
    %136 = vector.extract_strided_slice %132 {offsets = [0, 384], sizes = [8, 128], strides = [1, 1]} : vector<8x512xf32> to vector<8x128xf32>
    %c0_70 = arith.constant 0 : index
    %c0_71 = arith.constant 0 : index
    %137 = vector.load %arg9[%c0_70, %c0_71] : memref<8x128xf32, #tpu.memory_space<vmem>>, vector<8x128xf32>
    %138 = arith.mulf %134, %137 : vector<8x128xf32>
    %139 = arith.mulf %133, %135 : vector<8x128xf32>
    %140 = arith.addf %138, %139 : vector<8x128xf32>
    %141 = math.tanh %140 : vector<8x128xf32>
    %142 = arith.mulf %136, %141 : vector<8x128xf32>
    %c0_72 = arith.constant 0 : index
    %c0_73 = arith.constant 0 : index
    %143 = vector.load %arg8[%c0_72, %c0_73] : memref<8x128xf32, #tpu.memory_space<vmem>>, vector<8x128xf32>
    tpu.vector_store %arg8[%c0_72, %c0_73], %142 {strides = array<i32>} : memref<8x128xf32, #tpu.memory_space<vmem>>, vector<8x128xf32>,
    %c0_74 = arith.constant 0 : index
    %c0_75 = arith.constant 0 : index
    %144 = vector.load %arg9[%c0_74, %c0_75] : memref<8x128xf32, #tpu.memory_space<vmem>>, vector<8x128xf32>
    tpu.vector_store %arg9[%c0_74, %c0_75], %140 {strides = array<i32>} : memref<8x128xf32, #tpu.memory_space<vmem>>, vector<8x128xf32>,
    %c6_i32 = arith.constant 6 : i32
    %145 = arith.index_cast %c6_i32 : i32 to index
    %c0_76 = arith.constant 0 : index
    %c0_77 = arith.constant 0 : index
    %146 = vector.load %arg1[%145, %c0_76, %c0_77] : memref<8x8x512xf32, #tpu.memory_space<vmem>>, vector<1x8x512xf32>
    %147 = vector.shape_cast %146 : vector<1x8x512xf32> to vector<8x512xf32>
    %c0_78 = arith.constant 0 : index
    %c0_79 = arith.constant 0 : index
    %148 = vector.load %arg8[%c0_78, %c0_79] : memref<8x128xf32, #tpu.memory_space<vmem>>, vector<8x128xf32>
    %cst_80 = arith.constant dense<0.000000e+00> : vector<8x512xf32>
    %149 = tpu.matmul %148, %4, %cst_80 {dimension_numbers = #tpu.dot_dimension_numbers<[1], [0], [0], [1], [0, 0, 1, 1], [], []>} : vector<8x128xf32>, vector<128x512xf32>, vector<8x512xf32> -> vector<8x512xf32>
    %150 = arith.addf %147, %149 : vector<8x512xf32>
    %151 = math.tanh %150 : vector<8x512xf32>
    %152 = vector.broadcast %5 : vector<1x512xf32> to vector<8x512xf32>
    %153 = arith.mulf %152, %151 : vector<8x512xf32>
    %154 = vector.broadcast %6 : vector<1x512xf32> to vector<8x512xf32>
    %155 = arith.addf %153, %154 : vector<8x512xf32>
    %156 = vector.extract_strided_slice %155 {offsets = [0, 0], sizes = [8, 128], strides = [1, 1]} : vector<8x512xf32> to vector<8x128xf32>
    %157 = vector.extract_strided_slice %155 {offsets = [0, 128], sizes = [8, 128], strides = [1, 1]} : vector<8x512xf32> to vector<8x128xf32>
    %158 = vector.extract_strided_slice %155 {offsets = [0, 256], sizes = [8, 128], strides = [1, 1]} : vector<8x512xf32> to vector<8x128xf32>
    %159 = vector.extract_strided_slice %155 {offsets = [0, 384], sizes = [8, 128], strides = [1, 1]} : vector<8x512xf32> to vector<8x128xf32>
    %c0_81 = arith.constant 0 : index
    %c0_82 = arith.constant 0 : index
    %160 = vector.load %arg9[%c0_81, %c0_82] : memref<8x128xf32, #tpu.memory_space<vmem>>, vector<8x128xf32>
    %161 = arith.mulf %157, %160 : vector<8x128xf32>
    %162 = arith.mulf %156, %158 : vector<8x128xf32>
    %163 = arith.addf %161, %162 : vector<8x128xf32>
    %164 = math.tanh %163 : vector<8x128xf32>
    %165 = arith.mulf %159, %164 : vector<8x128xf32>
    %c0_83 = arith.constant 0 : index
    %c0_84 = arith.constant 0 : index
    %166 = vector.load %arg8[%c0_83, %c0_84] : memref<8x128xf32, #tpu.memory_space<vmem>>, vector<8x128xf32>
    tpu.vector_store %arg8[%c0_83, %c0_84], %165 {strides = array<i32>} : memref<8x128xf32, #tpu.memory_space<vmem>>, vector<8x128xf32>,
    %c0_85 = arith.constant 0 : index
    %c0_86 = arith.constant 0 : index
    %167 = vector.load %arg9[%c0_85, %c0_86] : memref<8x128xf32, #tpu.memory_space<vmem>>, vector<8x128xf32>
    tpu.vector_store %arg9[%c0_85, %c0_86], %163 {strides = array<i32>} : memref<8x128xf32, #tpu.memory_space<vmem>>, vector<8x128xf32>,
    %c7_i32 = arith.constant 7 : i32
    %168 = arith.index_cast %c7_i32 : i32 to index
    %c0_87 = arith.constant 0 : index
    %c0_88 = arith.constant 0 : index
    %169 = vector.load %arg1[%168, %c0_87, %c0_88] : memref<8x8x512xf32, #tpu.memory_space<vmem>>, vector<1x8x512xf32>
    %170 = vector.shape_cast %169 : vector<1x8x512xf32> to vector<8x512xf32>
    %c0_89 = arith.constant 0 : index
    %c0_90 = arith.constant 0 : index
    %171 = vector.load %arg8[%c0_89, %c0_90] : memref<8x128xf32, #tpu.memory_space<vmem>>, vector<8x128xf32>
    %cst_91 = arith.constant dense<0.000000e+00> : vector<8x512xf32>
    %172 = tpu.matmul %171, %4, %cst_91 {dimension_numbers = #tpu.dot_dimension_numbers<[1], [0], [0], [1], [0, 0, 1, 1], [], []>} : vector<8x128xf32>, vector<128x512xf32>, vector<8x512xf32> -> vector<8x512xf32>
    %173 = arith.addf %170, %172 : vector<8x512xf32>
    %174 = math.tanh %173 : vector<8x512xf32>
    %175 = vector.broadcast %5 : vector<1x512xf32> to vector<8x512xf32>
    %176 = arith.mulf %175, %174 : vector<8x512xf32>
    %177 = vector.broadcast %6 : vector<1x512xf32> to vector<8x512xf32>
    %178 = arith.addf %176, %177 : vector<8x512xf32>
    %179 = vector.extract_strided_slice %178 {offsets = [0, 0], sizes = [8, 128], strides = [1, 1]} : vector<8x512xf32> to vector<8x128xf32>
    %180 = vector.extract_strided_slice %178 {offsets = [0, 128], sizes = [8, 128], strides = [1, 1]} : vector<8x512xf32> to vector<8x128xf32>
    %181 = vector.extract_strided_slice %178 {offsets = [0, 256], sizes = [8, 128], strides = [1, 1]} : vector<8x512xf32> to vector<8x128xf32>
    %182 = vector.extract_strided_slice %178 {offsets = [0, 384], sizes = [8, 128], strides = [1, 1]} : vector<8x512xf32> to vector<8x128xf32>
    %c0_92 = arith.constant 0 : index
    %c0_93 = arith.constant 0 : index
    %183 = vector.load %arg9[%c0_92, %c0_93] : memref<8x128xf32, #tpu.memory_space<vmem>>, vector<8x128xf32>
    %184 = arith.mulf %180, %183 : vector<8x128xf32>
    %185 = arith.mulf %179, %181 : vector<8x128xf32>
    %186 = arith.addf %184, %185 : vector<8x128xf32>
    %187 = math.tanh %186 : vector<8x128xf32>
    %188 = arith.mulf %182, %187 : vector<8x128xf32>
    %c0_94 = arith.constant 0 : index
    %c0_95 = arith.constant 0 : index
    %189 = vector.load %arg8[%c0_94, %c0_95] : memref<8x128xf32, #tpu.memory_space<vmem>>, vector<8x128xf32>
    tpu.vector_store %arg8[%c0_94, %c0_95], %188 {strides = array<i32>} : memref<8x128xf32, #tpu.memory_space<vmem>>, vector<8x128xf32>,
    %c0_96 = arith.constant 0 : index
    %c0_97 = arith.constant 0 : index
    %190 = vector.load %arg9[%c0_96, %c0_97] : memref<8x128xf32, #tpu.memory_space<vmem>>, vector<8x128xf32>
    tpu.vector_store %arg9[%c0_96, %c0_97], %186 {strides = array<i32>} : memref<8x128xf32, #tpu.memory_space<vmem>>, vector<8x128xf32>,
    %c8_i32 = arith.constant 8 : i32
    %c0_98 = arith.constant 0 : index
    %c0_99 = arith.constant 0 : index
    %191 = vector.load %arg8[%c0_98, %c0_99] : memref<8x128xf32, #tpu.memory_space<vmem>>, vector<8x128xf32>
    %c0_100 = arith.constant 0 : index
    %c0_101 = arith.constant 0 : index
    %192 = vector.load %arg5[%c0_100, %c0_101] : memref<1x128xf32, #tpu.memory_space<vmem>>, vector<1x128xf32>
    %193 = tpu.transpose %191, [1, 0] : vector<8x128xf32> -> vector<128x8xf32>
    %cst_102 = arith.constant dense<0.000000e+00> : vector<1x8xf32>
    %194 = tpu.matmul %192, %193, %cst_102 {dimension_numbers = #tpu.dot_dimension_numbers<[1], [0], [0], [1], [0, 0, 1, 1], [], []>} : vector<1x128xf32>, vector<128x8xf32>, vector<1x8xf32> -> vector<1x8xf32>
    %c0_103 = arith.constant 0 : index
    %c0_104 = arith.constant 0 : index
    %195 = vector.load %arg6[%c0_103, %c0_104] : memref<1x8xf32, #tpu.memory_space<vmem>>, vector<1x8xf32>
    %196 = arith.addf %194, %195 : vector<1x8xf32>
    %c0_105 = arith.constant 0 : index
    %c0_106 = arith.constant 0 : index
    %197 = vector.load %arg7[%c0_105, %c0_106] : memref<1x8xf32, #tpu.memory_space<vmem>>, vector<1x8xf32>
    tpu.vector_store %arg7[%c0_105, %c0_106], %196 {strides = array<i32>} : memref<1x8xf32, #tpu.memory_space<vmem>>, vector<1x8xf32>,
    return
  }
  func.func @transform_0(%arg0: i32) -> (i32, i32, i32) {
    %c0_i32 = arith.constant 0 : i32
    %c0_i32_0 = arith.constant 0 : i32
    %c0_i32_1 = arith.constant 0 : i32
    return %c0_i32, %arg0, %c0_i32_0 : i32, i32, i32
  }
  func.func @transform_1(%arg0: i32) -> (i32, i32) {
    %c0_i32 = arith.constant 0 : i32
    %c0_i32_0 = arith.constant 0 : i32
    %c0_i32_1 = arith.constant 0 : i32
    return %c0_i32, %c0_i32_0 : i32, i32
  }
  func.func @transform_2(%arg0: i32) -> (i32, i32) {
    %c0_i32 = arith.constant 0 : i32
    %c0_i32_0 = arith.constant 0 : i32
    %c0_i32_1 = arith.constant 0 : i32
    return %c0_i32, %c0_i32_0 : i32, i32
  }
  func.func @transform_3(%arg0: i32) -> (i32, i32) {
    %c0_i32 = arith.constant 0 : i32
    %c0_i32_0 = arith.constant 0 : i32
    %c0_i32_1 = arith.constant 0 : i32
    return %c0_i32, %c0_i32_0 : i32, i32
  }
  func.func @transform_4(%arg0: i32) -> (i32, i32) {
    %c0_i32 = arith.constant 0 : i32
    %c0_i32_0 = arith.constant 0 : i32
    %c0_i32_1 = arith.constant 0 : i32
    return %c0_i32, %c0_i32_0 : i32, i32
  }
  func.func @transform_5(%arg0: i32) -> (i32, i32) {
    %c0_i32 = arith.constant 0 : i32
    %c0_i32_0 = arith.constant 0 : i32
    return %c0_i32, %arg0 : i32, i32
  }
  func.func @transform_6(%arg0: i32) -> (i32, i32) {
    %c0_i32 = arith.constant 0 : i32
    %c0_i32_0 = arith.constant 0 : i32
    return %c0_i32, %arg0 : i32, i32
  }
}

</mosaic_0001>

<llo_original>
// kernel: lstm_model_forward.1
$region0: #{lstm_model_forward.1}
  #allocation0 [shape = 'u32[]', space=smem, size = 0x4, offset = 0x4, fixed_abs, tag = 'smem constant byte address 0x4 - core index']
  #allocation1 [shape = 'u32[144,128]{1,0:T(1,128)}', space=vmem, size = 0x12000, scoped, tag = 'internal scratch']
  #allocation2 [shape = 'f32[8,128]{1,0:T(8,128)}', space=vmem, size = 0x1000, scoped, tag = 'scratch operand']
  #allocation3 [shape = 'f32[8,128]{1,0:T(8,128)}', space=vmem, size = 0x1000, scoped, tag = 'scratch operand']
  %s0 = inlined_call_operand.vmem [shape: f32[8,8,512], index: 0, kind: input, shape index: {}]
  %s1 = inlined_call_operand.vmem [shape: f32[128,512], index: 1, kind: input, shape index: {}]
  %s2 = inlined_call_operand.vmem [shape: f32[1,512], index: 2, kind: input, shape index: {}]
  %s3 = inlined_call_operand.vmem [shape: f32[1,512], index: 3, kind: input, shape index: {}]
  %s4 = inlined_call_operand.vmem [shape: f32[1,128], index: 4, kind: input, shape index: {}]
  %s5 = inlined_call_operand.vmem [shape: f32[1,8], index: 5, kind: input, shape index: {}]
  %s6 = inlined_call_operand.vmem [shape: f32[1,8], index: 6, kind: output, shape index: {}]
  %s7 = sld [smem:[#allocation0]]
  $region34: #{lstm_model_forward.1} parent=0
    _
  %s9 = ssub.s32 1, %s7
  %s10 = scalar_select 0, %s9, %s7
  // Predicated region
  $region2: #{lstm_model_forward.1} parent=0 // pred_check
    _
  $region3: #{lstm_model_forward.1} parent=0 // pred_check_branch
    %12 = sbr.rel (0) target = $region5
  $region4: #{lstm_model_forward.1} parent=0 // pred_region
    _
  $region5: #{lstm_model_forward.1} parent=0 // pred_fallthru
    _
  // Predicated region
  $region6: #{lstm_model_forward.1} parent=0 // pred_check
    _
  $region7: #{lstm_model_forward.1} parent=0 // pred_check_branch
    %14 = sbr.rel (0) target = $region9
  $region8: #{lstm_model_forward.1} parent=0 // pred_region
    _
  $region9: #{lstm_model_forward.1} parent=0 // pred_fallthru
    _
  // Predicated region
  $region10: #{lstm_model_forward.1} parent=0 // pred_check
    _
  $region11: #{lstm_model_forward.1} parent=0 // pred_check_branch
    %16 = sbr.rel (0) target = $region13
  $region12: #{lstm_model_forward.1} parent=0 // pred_region
    _
  $region13: #{lstm_model_forward.1} parent=0 // pred_fallthru
    _
  // Predicated region
  $region14: #{lstm_model_forward.1} parent=0 // pred_check
    _
  $region15: #{lstm_model_forward.1} parent=0 // pred_check_branch
    %18 = sbr.rel (0) target = $region17
  $region16: #{lstm_model_forward.1} parent=0 // pred_region
    _
  $region17: #{lstm_model_forward.1} parent=0 // pred_fallthru
    _
  // Predicated region
  $region18: #{lstm_model_forward.1} parent=0 // pred_check
    _
  $region19: #{lstm_model_forward.1} parent=0 // pred_check_branch
    %20 = sbr.rel (0) target = $region21
  $region20: #{lstm_model_forward.1} parent=0 // pred_region
    _
  $region21: #{lstm_model_forward.1} parent=0 // pred_fallthru
    _
  // Predicated region
  $region22: #{lstm_model_forward.1} parent=0 // pred_check
    _
  $region23: #{lstm_model_forward.1} parent=0 // pred_check_branch
    %22 = sbr.rel (0) target = $region25
  $region24: #{lstm_model_forward.1} parent=0 // pred_region
    _
  $region25: #{lstm_model_forward.1} parent=0 // pred_fallthru
    _
  %23 = vst [vmem:[#allocation2] sm:$0xff] 0.0
  %24 = vst [vmem:[#allocation3] sm:$0xff] 0.0
  %v25 = vld [vmem:[%s1] sm:$0xff]
  %v26 = vld [vmem:[%s1 + $0x8] sm:$0xff]
  %v27 = vld [vmem:[%s1 + $0x10] sm:$0xff]
  %v28 = vld [vmem:[%s1 + $0x18] sm:$0xff]
  %v29 = vld [vmem:[%s1 + $0x20] sm:$0xff]
  %v30 = vld [vmem:[%s1 + $0x28] sm:$0xff]
  %v31 = vld [vmem:[%s1 + $0x30] sm:$0xff]
  %v32 = vld [vmem:[%s1 + $0x38] sm:$0xff]
  %v33 = vld [vmem:[%s1 + $0x40] sm:$0xff]
  %v34 = vld [vmem:[%s1 + $0x48] sm:$0xff]
  %v35 = vld [vmem:[%s1 + $0x50] sm:$0xff]
  %v36 = vld [vmem:[%s1 + $0x58] sm:$0xff]
  %v37 = vld [vmem:[%s1 + $0x60] sm:$0xff]
  %v38 = vld [vmem:[%s1 + $0x68] sm:$0xff]
  %v39 = vld [vmem:[%s1 + $0x70] sm:$0xff]
  %v40 = vld [vmem:[%s1 + $0x78] sm:$0xff]
  %v41 = vld [vmem:[%s1 + $0x80] sm:$0xff]
  %v42 = vld [vmem:[%s1 + $0x88] sm:$0xff]
  %v43 = vld [vmem:[%s1 + $0x90] sm:$0xff]
  %v44 = vld [vmem:[%s1 + $0x98] sm:$0xff]
  %v45 = vld [vmem:[%s1 + $0xa0] sm:$0xff]
  %v46 = vld [vmem:[%s1 + $0xa8] sm:$0xff]
  %v47 = vld [vmem:[%s1 + $0xb0] sm:$0xff]
  %v48 = vld [vmem:[%s1 + $0xb8] sm:$0xff]
  %v49 = vld [vmem:[%s1 + $0xc0] sm:$0xff]
  %v50 = vld [vmem:[%s1 + $0xc8] sm:$0xff]
  %v51 = vld [vmem:[%s1 + $0xd0] sm:$0xff]
  %v52 = vld [vmem:[%s1 + $0xd8] sm:$0xff]
  %v53 = vld [vmem:[%s1 + $0xe0] sm:$0xff]
  %v54 = vld [vmem:[%s1 + $0xe8] sm:$0xff]
  %v55 = vld [vmem:[%s1 + $0xf0] sm:$0xff]
  %v56 = vld [vmem:[%s1 + $0xf8] sm:$0xff]
  %v57 = vld [vmem:[%s1 + $0x100] sm:$0xff]
  %v58 = vld [vmem:[%s1 + $0x108] sm:$0xff]
  %v59 = vld [vmem:[%s1 + $0x110] sm:$0xff]
  %v60 = vld [vmem:[%s1 + $0x118] sm:$0xff]
  %v61 = vld [vmem:[%s1 + $0x120] sm:$0xff]
  %v62 = vld [vmem:[%s1 + $0x128] sm:$0xff]
  %v63 = vld [vmem:[%s1 + $0x130] sm:$0xff]
  %v64 = vld [vmem:[%s1 + $0x138] sm:$0xff]
  %v65 = vld [vmem:[%s1 + $0x140] sm:$0xff]
  %v66 = vld [vmem:[%s1 + $0x148] sm:$0xff]
  %v67 = vld [vmem:[%s1 + $0x150] sm:$0xff]
  %v68 = vld [vmem:[%s1 + $0x158] sm:$0xff]
  %v69 = vld [vmem:[%s1 + $0x160] sm:$0xff]
  %v70 = vld [vmem:[%s1 + $0x168] sm:$0xff]
  %v71 = vld [vmem:[%s1 + $0x170] sm:$0xff]
  %v72 = vld [vmem:[%s1 + $0x178] sm:$0xff]
  %v73 = vld [vmem:[%s1 + $0x180] sm:$0xff]
  %v74 = vld [vmem:[%s1 + $0x188] sm:$0xff]
  %v75 = vld [vmem:[%s1 + $0x190] sm:$0xff]
  %v76 = vld [vmem:[%s1 + $0x198] sm:$0xff]
  %v77 = vld [vmem:[%s1 + $0x1a0] sm:$0xff]
  %v78 = vld [vmem:[%s1 + $0x1a8] sm:$0xff]
  %v79 = vld [vmem:[%s1 + $0x1b0] sm:$0xff]
  %v80 = vld [vmem:[%s1 + $0x1b8] sm:$0xff]
  %v81 = vld [vmem:[%s1 + $0x1c0] sm:$0xff]
  %v82 = vld [vmem:[%s1 + $0x1c8] sm:$0xff]
  %v83 = vld [vmem:[%s1 + $0x1d0] sm:$0xff]
  %v84 = vld [vmem:[%s1 + $0x1d8] sm:$0xff]
  %v85 = vld [vmem:[%s1 + $0x1e0] sm:$0xff]
  %v86 = vld [vmem:[%s1 + $0x1e8] sm:$0xff]
  %v87 = vld [vmem:[%s1 + $0x1f0] sm:$0xff]
  %v88 = vld [vmem:[%s1 + $0x1f8] sm:$0xff]
  %v89 = vld [vmem:[%s2] sm:$0xf]
  %v90 = vld [vmem:[%s3] sm:$0xf]
  %v91 = vld [vmem:[%s0] sm:$0xff]
  %v92 = vld [vmem:[%s0 + $0x8] sm:$0xff]
  %v93 = vld [vmem:[%s0 + $0x10] sm:$0xff]
  %v94 = vld [vmem:[%s0 + $0x18] sm:$0xff]
  %v95 = vld [vmem:[#allocation2] sm:$0xff]
  %96 = vmatprep.subr.mxu0 %v86
  %97 = vmatpush1.msra.mxu0 %v85
  %98 = vmatprep.subr.mxu0 %v82
  %99 = vmatpush1.msra.mxu0 %v81
  %100 = vmatprep.subr.mxu0 %v78
  %101 = vmatpush1.msra.mxu0 %v77
  %102 = vmatprep.subr.mxu0 %v74
  %103 = vmatpush1.msra.mxu0 %v73
  %104 = vmatprep.subr.mxu0 %v70
  %105 = vmatpush1.msra.mxu0 %v69
  %106 = vmatprep.subr.mxu0 %v66
  %107 = vmatpush1.msra.mxu0 %v65
  %108 = vmatprep.subr.mxu0 %v62
  %109 = vmatpush1.msra.mxu0 %v61
  %110 = vmatprep.subr.mxu0 %v58
  %111 = vmatpush1.msra.mxu0 %v57
  %112 = vmatprep.subr.mxu0 %v54
  %113 = vmatpush1.msra.mxu0 %v53
  %114 = vmatprep.subr.mxu0 %v50
  %115 = vmatpush1.msra.mxu0 %v49
  %116 = vmatprep.subr.mxu0 %v46
  %117 = vmatpush1.msra.mxu0 %v45
  %118 = vmatprep.subr.mxu0 %v42
  %119 = vmatpush1.msra.mxu0 %v41
  %120 = vmatprep.subr.mxu0 %v38
  %121 = vmatpush1.msra.mxu0 %v37
  %122 = vmatprep.subr.mxu0 %v34
  %123 = vmatpush1.msra.mxu0 %v33
  %124 = vmatprep.subr.mxu0 %v30
  %125 = vmatpush1.msra.mxu0 %v29
  %126 = vmatprep.subr.mxu0 %v26
  %127 = vmatpush1.msra.mxu0 %v25
  %128 = vmatprep.subr.mxu0 0.0
  %129 = vmatpush2.msra.mxu0 0.0
  %130 = vmatprep.subr.mxu0 0.0
  %131 = vmatpush2.msra.mxu0 0.0
  %132 = vmatprep.subr.mxu0 0.0
  %133 = vmatpush2.msra.mxu0 0.0
  %134 = vmatprep.subr.mxu0 0.0
  %135 = vmatpush2.msra.mxu0 0.0
  %136 = vmatprep.subr.mxu0 0.0
  %137 = vmatpush2.msra.mxu0 0.0
  %138 = vmatprep.subr.mxu0 0.0
  %139 = vmatpush2.msra.mxu0 0.0
  %140 = vmatprep.subr.mxu0 0.0
  %141 = vmatpush2.msra.mxu0 0.0
  %142 = vmatprep.subr.mxu0 0.0
  %143 = vmatpush2.msra.mxu0 0.0
  %144 = vmatprep.subr.mxu0 0.0
  %145 = vmatpush2.msra.mxu0 0.0
  %146 = vmatprep.subr.mxu0 0.0
  %147 = vmatpush2.msra.mxu0 0.0
  %148 = vmatprep.subr.mxu0 0.0
  %149 = vmatpush2.msra.mxu0 0.0
  %150 = vmatprep.subr.mxu0 0.0
  %151 = vmatpush2.msra.mxu0 0.0
  %152 = vmatprep.subr.mxu0 0.0
  %153 = vmatpush2.msra.mxu0 0.0
  %154 = vmatprep.subr.mxu0 0.0
  %155 = vmatpush2.msra.mxu0 0.0
  %156 = vmatprep.subr.mxu0 0.0
  %157 = vmatpush2.msra.mxu0 0.0
  %158 = vmatprep.subr.mxu0 0.0
  %159 = vmatpush2.msra.mxu0 0.0
  %160 = vmatprep.mubr.f32.mxu0 0.0
  %161 = vmatmul.mubr.f32.gmra.mxu0 %v95
  %v162 = vpop.f32.mrf.mxu0
  %v163 = vadd.f32 0.0, %v162
  %v164 = vpop.f32.mrf.mxu0
  %v165 = vadd.f32 0.0, %v164
  %166 = vdwg.mxu0
  %167 = vmatprep.subr.mxu0 %v88
  %168 = vmatpush1.msra.mxu0 %v87
  %169 = vmatprep.subr.mxu0 %v84
  %170 = vmatpush1.msra.mxu0 %v83
  %171 = vmatprep.subr.mxu0 %v80
  %172 = vmatpush1.msra.mxu0 %v79
  %173 = vmatprep.subr.mxu0 %v76
  %174 = vmatpush1.msra.mxu0 %v75
  %175 = vmatprep.subr.mxu0 %v72
  %176 = vmatpush1.msra.mxu0 %v71
  %177 = vmatprep.subr.mxu0 %v68
  %178 = vmatpush1.msra.mxu0 %v67
  %179 = vmatprep.subr.mxu0 %v64
  %180 = vmatpush1.msra.mxu0 %v63
  %181 = vmatprep.subr.mxu0 %v60
  %182 = vmatpush1.msra.mxu0 %v59
  %183 = vmatprep.subr.mxu0 %v56
  %184 = vmatpush1.msra.mxu0 %v55
  %185 = vmatprep.subr.mxu0 %v52
  %186 = vmatpush1.msra.mxu0 %v51
  %187 = vmatprep.subr.mxu0 %v48
  %188 = vmatpush1.msra.mxu0 %v47
  %189 = vmatprep.subr.mxu0 %v44
  %190 = vmatpush1.msra.mxu0 %v43
  %191 = vmatprep.subr.mxu0 %v40
  %192 = vmatpush1.msra.mxu0 %v39
  %193 = vmatprep.subr.mxu0 %v36
  %194 = vmatpush1.msra.mxu0 %v35
  %195 = vmatprep.subr.mxu0 %v32
  %196 = vmatpush1.msra.mxu0 %v31
  %197 = vmatprep.subr.mxu0 %v28
  %198 = vmatpush1.msra.mxu0 %v27
  %199 = vmatprep.subr.mxu0 0.0
  %200 = vmatpush2.msra.mxu0 0.0
  %201 = vmatprep.subr.mxu0 0.0
  %202 = vmatpush2.msra.mxu0 0.0
  %203 = vmatprep.subr.mxu0 0.0
  %204 = vmatpush2.msra.mxu0 0.0
  %205 = vmatprep.subr.mxu0 0.0
  %206 = vmatpush2.msra.mxu0 0.0
  %207 = vmatprep.subr.mxu0 0.0
  %208 = vmatpush2.msra.mxu0 0.0
  %209 = vmatprep.subr.mxu0 0.0
  %210 = vmatpush2.msra.mxu0 0.0
  %211 = vmatprep.subr.mxu0 0.0
  %212 = vmatpush2.msra.mxu0 0.0
  %213 = vmatprep.subr.mxu0 0.0
  %214 = vmatpush2.msra.mxu0 0.0
  %215 = vmatprep.subr.mxu0 0.0
  %216 = vmatpush2.msra.mxu0 0.0
  %217 = vmatprep.subr.mxu0 0.0
  %218 = vmatpush2.msra.mxu0 0.0
  %219 = vmatprep.subr.mxu0 0.0
  %220 = vmatpush2.msra.mxu0 0.0
  %221 = vmatprep.subr.mxu0 0.0
  %222 = vmatpush2.msra.mxu0 0.0
  %223 = vmatprep.subr.mxu0 0.0
  %224 = vmatpush2.msra.mxu0 0.0
  %225 = vmatprep.subr.mxu0 0.0
  %226 = vmatpush2.msra.mxu0 0.0
  %227 = vmatprep.subr.mxu0 0.0
  %228 = vmatpush2.msra.mxu0 0.0
  %229 = vmatprep.subr.mxu0 0.0
  %230 = vmatpush2.msra.mxu0 0.0
  %231 = vmatprep.mubr.f32.mxu0 0.0
  %232 = vmatmul.mubr.f32.gmra.mxu0 %v95
  %v233 = vpop.f32.mrf.mxu0
  %v234 = vadd.f32 0.0, %v233
  %v235 = vpop.f32.mrf.mxu0
  %v236 = vadd.f32 0.0, %v235
  %237 = vdwg.mxu0
  %v238 = vadd.f32 %v91, %v163
  %v239 = vadd.f32 %v92, %v165
  %v240 = vadd.f32 %v93, %v234
  %v241 = vadd.f32 %v94, %v236
  %v242 = vtanh.pop %v238
  %v243 = vtanh.pop %v239
  %v244 = vtanh.pop %v240
  %v245 = vtanh.pop %v241
  %v247 = vlaneseq
  %v248 = vshrl.u32 %v247, 7
  %v249 = vsub.s32 0, %v248
  %v250 = vrot.slane %v89, %v249
  %v251 = vlaneseq
  %v252 = vshrl.u32 %v251, 7
  %v253 = vsub.s32 1, %v252
  %v254 = vrot.slane %v89, %v253
  %v255 = vlaneseq
  %v256 = vshrl.u32 %v255, 7
  %v257 = vsub.s32 2, %v256
  %v258 = vrot.slane %v89, %v257
  %v259 = vlaneseq
  %v260 = vshrl.u32 %v259, 7
  %v261 = vsub.s32 3, %v260
  %v262 = vrot.slane %v89, %v261
  %v267 = vmul.f32 %v250, %v242
  %v268 = vmul.f32 %v254, %v243
  %v269 = vmul.f32 %v258, %v244
  %v270 = vmul.f32 %v262, %v245
  %v272 = vlaneseq
  %v273 = vshrl.u32 %v272, 7
  %v274 = vsub.s32 0, %v273
  %v275 = vrot.slane %v90, %v274
  %v276 = vlaneseq
  %v277 = vshrl.u32 %v276, 7
  %v278 = vsub.s32 1, %v277
  %v279 = vrot.slane %v90, %v278
  %v280 = vlaneseq
  %v281 = vshrl.u32 %v280, 7
  %v282 = vsub.s32 2, %v281
  %v283 = vrot.slane %v90, %v282
  %v284 = vlaneseq
  %v285 = vshrl.u32 %v284, 7
  %v286 = vsub.s32 3, %v285
  %v287 = vrot.slane %v90, %v286
  %v292 = vadd.f32 %v267, %v275
  %v293 = vadd.f32 %v268, %v279
  %v294 = vadd.f32 %v269, %v283
  %v295 = vadd.f32 %v270, %v287
  %v296 = vld [vmem:[#allocation3] sm:$0xff]
  %v297 = vmul.f32 %v293, %v296
  %v298 = vmul.f32 %v292, %v294
  %v299 = vadd.f32 %v297, %v298
  %v300 = vtanh.pop %v299
  %v301 = vmul.f32 %v295, %v300
  %302 = vst [vmem:[#allocation2] sm:$0xff] %v301
  %303 = vst [vmem:[#allocation3] sm:$0xff] %v299
  %s304 = scalar_lea.vmem %s0, 32
  %v305 = vld [vmem:[%s304] sm:$0xff]
  %v306 = vld [vmem:[%s304 + $0x8] sm:$0xff]
  %v307 = vld [vmem:[%s304 + $0x10] sm:$0xff]
  %v308 = vld [vmem:[%s304 + $0x18] sm:$0xff]
  %v309 = vld [vmem:[#allocation2] sm:$0xff]
  %310 = vmatprep.subr.mxu0 %v86
  %311 = vmatpush1.msra.mxu0 %v85
  %312 = vmatprep.subr.mxu0 %v82
  %313 = vmatpush1.msra.mxu0 %v81
  %314 = vmatprep.subr.mxu0 %v78
  %315 = vmatpush1.msra.mxu0 %v77
  %316 = vmatprep.subr.mxu0 %v74
  %317 = vmatpush1.msra.mxu0 %v73
  %318 = vmatprep.subr.mxu0 %v70
  %319 = vmatpush1.msra.mxu0 %v69
  %320 = vmatprep.subr.mxu0 %v66
  %321 = vmatpush1.msra.mxu0 %v65
  %322 = vmatprep.subr.mxu0 %v62
  %323 = vmatpush1.msra.mxu0 %v61
  %324 = vmatprep.subr.mxu0 %v58
  %325 = vmatpush1.msra.mxu0 %v57
  %326 = vmatprep.subr.mxu0 %v54
  %327 = vmatpush1.msra.mxu0 %v53
  %328 = vmatprep.subr.mxu0 %v50
  %329 = vmatpush1.msra.mxu0 %v49
  %330 = vmatprep.subr.mxu0 %v46
  %331 = vmatpush1.msra.mxu0 %v45
  %332 = vmatprep.subr.mxu0 %v42
  %333 = vmatpush1.msra.mxu0 %v41
  %334 = vmatprep.subr.mxu0 %v38
  %335 = vmatpush1.msra.mxu0 %v37
  %336 = vmatprep.subr.mxu0 %v34
  %337 = vmatpush1.msra.mxu0 %v33
  %338 = vmatprep.subr.mxu0 %v30
  %339 = vmatpush1.msra.mxu0 %v29
  %340 = vmatprep.subr.mxu0 %v26
  %341 = vmatpush1.msra.mxu0 %v25
  %342 = vmatprep.subr.mxu0 0.0
  %343 = vmatpush2.msra.mxu0 0.0
  %344 = vmatprep.subr.mxu0 0.0
  %345 = vmatpush2.msra.mxu0 0.0
  %346 = vmatprep.subr.mxu0 0.0
  %347 = vmatpush2.msra.mxu0 0.0
  %348 = vmatprep.subr.mxu0 0.0
  %349 = vmatpush2.msra.mxu0 0.0
  %350 = vmatprep.subr.mxu0 0.0
  %351 = vmatpush2.msra.mxu0 0.0
  %352 = vmatprep.subr.mxu0 0.0
  %353 = vmatpush2.msra.mxu0 0.0
  %354 = vmatprep.subr.mxu0 0.0
  %355 = vmatpush2.msra.mxu0 0.0
  %356 = vmatprep.subr.mxu0 0.0
  %357 = vmatpush2.msra.mxu0 0.0
  %358 = vmatprep.subr.mxu0 0.0
  %359 = vmatpush2.msra.mxu0 0.0
  %360 = vmatprep.subr.mxu0 0.0
  %361 = vmatpush2.msra.mxu0 0.0
  %362 = vmatprep.subr.mxu0 0.0
  %363 = vmatpush2.msra.mxu0 0.0
  %364 = vmatprep.subr.mxu0 0.0
  %365 = vmatpush2.msra.mxu0 0.0
  %366 = vmatprep.subr.mxu0 0.0
  %367 = vmatpush2.msra.mxu0 0.0
  %368 = vmatprep.subr.mxu0 0.0
  %369 = vmatpush2.msra.mxu0 0.0
  %370 = vmatprep.subr.mxu0 0.0
  %371 = vmatpush2.msra.mxu0 0.0
  %372 = vmatprep.subr.mxu0 0.0
  %373 = vmatpush2.msra.mxu0 0.0
  %374 = vmatprep.mubr.f32.mxu0 0.0
  %375 = vmatmul.mubr.f32.gmra.mxu0 %v309
  %v376 = vpop.f32.mrf.mxu0
  %v377 = vadd.f32 0.0, %v376
  %v378 = vpop.f32.mrf.mxu0
  %v379 = vadd.f32 0.0, %v378
  %380 = vdwg.mxu0
  %381 = vmatprep.subr.mxu0 %v88
  %382 = vmatpush1.msra.mxu0 %v87
  %383 = vmatprep.subr.mxu0 %v84
  %384 = vmatpush1.msra.mxu0 %v83
  %385 = vmatprep.subr.mxu0 %v80
  %386 = vmatpush1.msra.mxu0 %v79
  %387 = vmatprep.subr.mxu0 %v76
  %388 = vmatpush1.msra.mxu0 %v75
  %389 = vmatprep.subr.mxu0 %v72
  %390 = vmatpush1.msra.mxu0 %v71
  %391 = vmatprep.subr.mxu0 %v68
  %392 = vmatpush1.msra.mxu0 %v67
  %393 = vmatprep.subr.mxu0 %v64
  %394 = vmatpush1.msra.mxu0 %v63
  %395 = vmatprep.subr.mxu0 %v60
  %396 = vmatpush1.msra.mxu0 %v59
  %397 = vmatprep.subr.mxu0 %v56
  %398 = vmatpush1.msra.mxu0 %v55
  %399 = vmatprep.subr.mxu0 %v52
  %400 = vmatpush1.msra.mxu0 %v51
  %401 = vmatprep.subr.mxu0 %v48
  %402 = vmatpush1.msra.mxu0 %v47
  %403 = vmatprep.subr.mxu0 %v44
  %404 = vmatpush1.msra.mxu0 %v43
  %405 = vmatprep.subr.mxu0 %v40
  %406 = vmatpush1.msra.mxu0 %v39
  %407 = vmatprep.subr.mxu0 %v36
  %408 = vmatpush1.msra.mxu0 %v35
  %409 = vmatprep.subr.mxu0 %v32
  %410 = vmatpush1.msra.mxu0 %v31
  %411 = vmatprep.subr.mxu0 %v28
  %412 = vmatpush1.msra.mxu0 %v27
  %413 = vmatprep.subr.mxu0 0.0
  %414 = vmatpush2.msra.mxu0 0.0
  %415 = vmatprep.subr.mxu0 0.0
  %416 = vmatpush2.msra.mxu0 0.0
  %417 = vmatprep.subr.mxu0 0.0
  %418 = vmatpush2.msra.mxu0 0.0
  %419 = vmatprep.subr.mxu0 0.0
  %420 = vmatpush2.msra.mxu0 0.0
  %421 = vmatprep.subr.mxu0 0.0
  %422 = vmatpush2.msra.mxu0 0.0
  %423 = vmatprep.subr.mxu0 0.0
  %424 = vmatpush2.msra.mxu0 0.0
  %425 = vmatprep.subr.mxu0 0.0
  %426 = vmatpush2.msra.mxu0 0.0
  %427 = vmatprep.subr.mxu0 0.0
  %428 = vmatpush2.msra.mxu0 0.0
  %429 = vmatprep.subr.mxu0 0.0
  %430 = vmatpush2.msra.mxu0 0.0
  %431 = vmatprep.subr.mxu0 0.0
  %432 = vmatpush2.msra.mxu0 0.0
  %433 = vmatprep.subr.mxu0 0.0
  %434 = vmatpush2.msra.mxu0 0.0
  %435 = vmatprep.subr.mxu0 0.0
  %436 = vmatpush2.msra.mxu0 0.0
  %437 = vmatprep.subr.mxu0 0.0
  %438 = vmatpush2.msra.mxu0 0.0
  %439 = vmatprep.subr.mxu0 0.0
  %440 = vmatpush2.msra.mxu0 0.0
  %441 = vmatprep.subr.mxu0 0.0
  %442 = vmatpush2.msra.mxu0 0.0
  %443 = vmatprep.subr.mxu0 0.0
  %444 = vmatpush2.msra.mxu0 0.0
  %445 = vmatprep.mubr.f32.mxu0 0.0
  %446 = vmatmul.mubr.f32.gmra.mxu0 %v309
  %v447 = vpop.f32.mrf.mxu0
  %v448 = vadd.f32 0.0, %v447
  %v449 = vpop.f32.mrf.mxu0
  %v450 = vadd.f32 0.0, %v449
  %451 = vdwg.mxu0
  %v452 = vadd.f32 %v305, %v377
  %v453 = vadd.f32 %v306, %v379
  %v454 = vadd.f32 %v307, %v448
  %v455 = vadd.f32 %v308, %v450
  %v456 = vtanh.pop %v452
  %v457 = vtanh.pop %v453
  %v458 = vtanh.pop %v454
  %v459 = vtanh.pop %v455
  %v460 = vmul.f32 %v250, %v456
  %v461 = vmul.f32 %v254, %v457
  %v462 = vmul.f32 %v258, %v458
  %v463 = vmul.f32 %v262, %v459
  %v464 = vadd.f32 %v460, %v275
  %v465 = vadd.f32 %v461, %v279
  %v466 = vadd.f32 %v462, %v283
  %v467 = vadd.f32 %v463, %v287
  %v468 = vld [vmem:[#allocation3] sm:$0xff]
  %v469 = vmul.f32 %v465, %v468
  %v470 = vmul.f32 %v464, %v466
  %v471 = vadd.f32 %v469, %v470
  %v472 = vtanh.pop %v471
  %v473 = vmul.f32 %v467, %v472
  %474 = vst [vmem:[#allocation2] sm:$0xff] %v473
  %475 = vst [vmem:[#allocation3] sm:$0xff] %v471
  %s476 = scalar_lea.vmem %s0, 64
  %v477 = vld [vmem:[%s476] sm:$0xff]
  %v478 = vld [vmem:[%s476 + $0x8] sm:$0xff]
  %v479 = vld [vmem:[%s476 + $0x10] sm:$0xff]
  %v480 = vld [vmem:[%s476 + $0x18] sm:$0xff]
  %v481 = vld [vmem:[#allocation2] sm:$0xff]
  %482 = vmatprep.subr.mxu0 %v86
  %483 = vmatpush1.msra.mxu0 %v85
  %484 = vmatprep.subr.mxu0 %v82
  %485 = vmatpush1.msra.mxu0 %v81
  %486 = vmatprep.subr.mxu0 %v78
  %487 = vmatpush1.msra.mxu0 %v77
  %488 = vmatprep.subr.mxu0 %v74
  %489 = vmatpush1.msra.mxu0 %v73
  %490 = vmatprep.subr.mxu0 %v70
  %491 = vmatpush1.msra.mxu0 %v69
  %492 = vmatprep.subr.mxu0 %v66
  %493 = vmatpush1.msra.mxu0 %v65
  %494 = vmatprep.subr.mxu0 %v62
  %495 = vmatpush1.msra.mxu0 %v61
  %496 = vmatprep.subr.mxu0 %v58
  %497 = vmatpush1.msra.mxu0 %v57
  %498 = vmatprep.subr.mxu0 %v54
  %499 = vmatpush1.msra.mxu0 %v53
  %500 = vmatprep.subr.mxu0 %v50
  %501 = vmatpush1.msra.mxu0 %v49
  %502 = vmatprep.subr.mxu0 %v46
  %503 = vmatpush1.msra.mxu0 %v45
  %504 = vmatprep.subr.mxu0 %v42
  %505 = vmatpush1.msra.mxu0 %v41
  %506 = vmatprep.subr.mxu0 %v38
  %507 = vmatpush1.msra.mxu0 %v37
  %508 = vmatprep.subr.mxu0 %v34
  %509 = vmatpush1.msra.mxu0 %v33
  %510 = vmatprep.subr.mxu0 %v30
  %511 = vmatpush1.msra.mxu0 %v29
  %512 = vmatprep.subr.mxu0 %v26
  %513 = vmatpush1.msra.mxu0 %v25
  %514 = vmatprep.subr.mxu0 0.0
  %515 = vmatpush2.msra.mxu0 0.0
  %516 = vmatprep.subr.mxu0 0.0
  %517 = vmatpush2.msra.mxu0 0.0
  %518 = vmatprep.subr.mxu0 0.0
  %519 = vmatpush2.msra.mxu0 0.0
  %520 = vmatprep.subr.mxu0 0.0
  %521 = vmatpush2.msra.mxu0 0.0
  %522 = vmatprep.subr.mxu0 0.0
  %523 = vmatpush2.msra.mxu0 0.0
  %524 = vmatprep.subr.mxu0 0.0
  %525 = vmatpush2.msra.mxu0 0.0
  %526 = vmatprep.subr.mxu0 0.0
  %527 = vmatpush2.msra.mxu0 0.0
  %528 = vmatprep.subr.mxu0 0.0
  %529 = vmatpush2.msra.mxu0 0.0
  %530 = vmatprep.subr.mxu0 0.0
  %531 = vmatpush2.msra.mxu0 0.0
  %532 = vmatprep.subr.mxu0 0.0
  %533 = vmatpush2.msra.mxu0 0.0
  %534 = vmatprep.subr.mxu0 0.0
  %535 = vmatpush2.msra.mxu0 0.0
  %536 = vmatprep.subr.mxu0 0.0
  %537 = vmatpush2.msra.mxu0 0.0
  %538 = vmatprep.subr.mxu0 0.0
  %539 = vmatpush2.msra.mxu0 0.0
  %540 = vmatprep.subr.mxu0 0.0
  %541 = vmatpush2.msra.mxu0 0.0
  %542 = vmatprep.subr.mxu0 0.0
  %543 = vmatpush2.msra.mxu0 0.0
  %544 = vmatprep.subr.mxu0 0.0
  %545 = vmatpush2.msra.mxu0 0.0
  %546 = vmatprep.mubr.f32.mxu0 0.0
  %547 = vmatmul.mubr.f32.gmra.mxu0 %v481
  %v548 = vpop.f32.mrf.mxu0
  %v549 = vadd.f32 0.0, %v548
  %v550 = vpop.f32.mrf.mxu0
  %v551 = vadd.f32 0.0, %v550
  %552 = vdwg.mxu0
  %553 = vmatprep.subr.mxu0 %v88
  %554 = vmatpush1.msra.mxu0 %v87
  %555 = vmatprep.subr.mxu0 %v84
  %556 = vmatpush1.msra.mxu0 %v83
  %557 = vmatprep.subr.mxu0 %v80
  %558 = vmatpush1.msra.mxu0 %v79
  %559 = vmatprep.subr.mxu0 %v76
  %560 = vmatpush1.msra.mxu0 %v75
  %561 = vmatprep.subr.mxu0 %v72
  %562 = vmatpush1.msra.mxu0 %v71
  %563 = vmatprep.subr.mxu0 %v68
  %564 = vmatpush1.msra.mxu0 %v67
  %565 = vmatprep.subr.mxu0 %v64
  %566 = vmatpush1.msra.mxu0 %v63
  %567 = vmatprep.subr.mxu0 %v60
  %568 = vmatpush1.msra.mxu0 %v59
  %569 = vmatprep.subr.mxu0 %v56
  %570 = vmatpush1.msra.mxu0 %v55
  %571 = vmatprep.subr.mxu0 %v52
  %572 = vmatpush1.msra.mxu0 %v51
  %573 = vmatprep.subr.mxu0 %v48
  %574 = vmatpush1.msra.mxu0 %v47
  %575 = vmatprep.subr.mxu0 %v44
  %576 = vmatpush1.msra.mxu0 %v43
  %577 = vmatprep.subr.mxu0 %v40
  %578 = vmatpush1.msra.mxu0 %v39
  %579 = vmatprep.subr.mxu0 %v36
  %580 = vmatpush1.msra.mxu0 %v35
  %581 = vmatprep.subr.mxu0 %v32
  %582 = vmatpush1.msra.mxu0 %v31
  %583 = vmatprep.subr.mxu0 %v28
  %584 = vmatpush1.msra.mxu0 %v27
  %585 = vmatprep.subr.mxu0 0.0
  %586 = vmatpush2.msra.mxu0 0.0
  %587 = vmatprep.subr.mxu0 0.0
  %588 = vmatpush2.msra.mxu0 0.0
  %589 = vmatprep.subr.mxu0 0.0
  %590 = vmatpush2.msra.mxu0 0.0
  %591 = vmatprep.subr.mxu0 0.0
  %592 = vmatpush2.msra.mxu0 0.0
  %593 = vmatprep.subr.mxu0 0.0
  %594 = vmatpush2.msra.mxu0 0.0
  %595 = vmatprep.subr.mxu0 0.0
  %596 = vmatpush2.msra.mxu0 0.0
  %597 = vmatprep.subr.mxu0 0.0
  %598 = vmatpush2.msra.mxu0 0.0
  %599 = vmatprep.subr.mxu0 0.0
  %600 = vmatpush2.msra.mxu0 0.0
  %601 = vmatprep.subr.mxu0 0.0
  %602 = vmatpush2.msra.mxu0 0.0
  %603 = vmatprep.subr.mxu0 0.0
  %604 = vmatpush2.msra.mxu0 0.0
  %605 = vmatprep.subr.mxu0 0.0
  %606 = vmatpush2.msra.mxu0 0.0
  %607 = vmatprep.subr.mxu0 0.0
  %608 = vmatpush2.msra.mxu0 0.0
  %609 = vmatprep.subr.mxu0 0.0
  %610 = vmatpush2.msra.mxu0 0.0
  %611 = vmatprep.subr.mxu0 0.0
  %612 = vmatpush2.msra.mxu0 0.0
  %613 = vmatprep.subr.mxu0 0.0
  %614 = vmatpush2.msra.mxu0 0.0
  %615 = vmatprep.subr.mxu0 0.0
  %616 = vmatpush2.msra.mxu0 0.0
  %617 = vmatprep.mubr.f32.mxu0 0.0
  %618 = vmatmul.mubr.f32.gmra.mxu0 %v481
  %v619 = vpop.f32.mrf.mxu0
  %v620 = vadd.f32 0.0, %v619
  %v621 = vpop.f32.mrf.mxu0
  %v622 = vadd.f32 0.0, %v621
  %623 = vdwg.mxu0
  %v624 = vadd.f32 %v477, %v549
  %v625 = vadd.f32 %v478, %v551
  %v626 = vadd.f32 %v479, %v620
  %v627 = vadd.f32 %v480, %v622
  %v628 = vtanh.pop %v624
  %v629 = vtanh.pop %v625
  %v630 = vtanh.pop %v626
  %v631 = vtanh.pop %v627
  %v632 = vmul.f32 %v250, %v628
  %v633 = vmul.f32 %v254, %v629
  %v634 = vmul.f32 %v258, %v630
  %v635 = vmul.f32 %v262, %v631
  %v636 = vadd.f32 %v632, %v275
  %v637 = vadd.f32 %v633, %v279
  %v638 = vadd.f32 %v634, %v283
  %v639 = vadd.f32 %v635, %v287
  %v640 = vld [vmem:[#allocation3] sm:$0xff]
  %v641 = vmul.f32 %v637, %v640
  %v642 = vmul.f32 %v636, %v638
  %v643 = vadd.f32 %v641, %v642
  %v644 = vtanh.pop %v643
  %v645 = vmul.f32 %v639, %v644
  %646 = vst [vmem:[#allocation2] sm:$0xff] %v645
  %647 = vst [vmem:[#allocation3] sm:$0xff] %v643
  %s648 = scalar_lea.vmem %s0, 96
  %v649 = vld [vmem:[%s648] sm:$0xff]
  %v650 = vld [vmem:[%s648 + $0x8] sm:$0xff]
  %v651 = vld [vmem:[%s648 + $0x10] sm:$0xff]
  %v652 = vld [vmem:[%s648 + $0x18] sm:$0xff]
  %v653 = vld [vmem:[#allocation2] sm:$0xff]
  %654 = vmatprep.subr.mxu0 %v86
  %655 = vmatpush1.msra.mxu0 %v85
  %656 = vmatprep.subr.mxu0 %v82
  %657 = vmatpush1.msra.mxu0 %v81
  %658 = vmatprep.subr.mxu0 %v78
  %659 = vmatpush1.msra.mxu0 %v77
  %660 = vmatprep.subr.mxu0 %v74
  %661 = vmatpush1.msra.mxu0 %v73
  %662 = vmatprep.subr.mxu0 %v70
  %663 = vmatpush1.msra.mxu0 %v69
  %664 = vmatprep.subr.mxu0 %v66
  %665 = vmatpush1.msra.mxu0 %v65
  %666 = vmatprep.subr.mxu0 %v62
  %667 = vmatpush1.msra.mxu0 %v61
  %668 = vmatprep.subr.mxu0 %v58
  %669 = vmatpush1.msra.mxu0 %v57
  %670 = vmatprep.subr.mxu0 %v54
  %671 = vmatpush1.msra.mxu0 %v53
  %672 = vmatprep.subr.mxu0 %v50
  %673 = vmatpush1.msra.mxu0 %v49
  %674 = vmatprep.subr.mxu0 %v46
  %675 = vmatpush1.msra.mxu0 %v45
  %676 = vmatprep.subr.mxu0 %v42
  %677 = vmatpush1.msra.mxu0 %v41
  %678 = vmatprep.subr.mxu0 %v38
  %679 = vmatpush1.msra.mxu0 %v37
  %680 = vmatprep.subr.mxu0 %v34
  %681 = vmatpush1.msra.mxu0 %v33
  %682 = vmatprep.subr.mxu0 %v30
  %683 = vmatpush1.msra.mxu0 %v29
  %684 = vmatprep.subr.mxu0 %v26
  %685 = vmatpush1.msra.mxu0 %v25
  %686 = vmatprep.subr.mxu0 0.0
  %687 = vmatpush2.msra.mxu0 0.0
  %688 = vmatprep.subr.mxu0 0.0
  %689 = vmatpush2.msra.mxu0 0.0
  %690 = vmatprep.subr.mxu0 0.0
  %691 = vmatpush2.msra.mxu0 0.0
  %692 = vmatprep.subr.mxu0 0.0
  %693 = vmatpush2.msra.mxu0 0.0
  %694 = vmatprep.subr.mxu0 0.0
  %695 = vmatpush2.msra.mxu0 0.0
  %696 = vmatprep.subr.mxu0 0.0
  %697 = vmatpush2.msra.mxu0 0.0
  %698 = vmatprep.subr.mxu0 0.0
  %699 = vmatpush2.msra.mxu0 0.0
  %700 = vmatprep.subr.mxu0 0.0
  %701 = vmatpush2.msra.mxu0 0.0
  %702 = vmatprep.subr.mxu0 0.0
  %703 = vmatpush2.msra.mxu0 0.0
  %704 = vmatprep.subr.mxu0 0.0
  %705 = vmatpush2.msra.mxu0 0.0
  %706 = vmatprep.subr.mxu0 0.0
  %707 = vmatpush2.msra.mxu0 0.0
  %708 = vmatprep.subr.mxu0 0.0
  %709 = vmatpush2.msra.mxu0 0.0
  %710 = vmatprep.subr.mxu0 0.0
  %711 = vmatpush2.msra.mxu0 0.0
  %712 = vmatprep.subr.mxu0 0.0
  %713 = vmatpush2.msra.mxu0 0.0
  %714 = vmatprep.subr.mxu0 0.0
  %715 = vmatpush2.msra.mxu0 0.0
  %716 = vmatprep.subr.mxu0 0.0
  %717 = vmatpush2.msra.mxu0 0.0
  %718 = vmatprep.mubr.f32.mxu0 0.0
  %719 = vmatmul.mubr.f32.gmra.mxu0 %v653
  %v720 = vpop.f32.mrf.mxu0
  %v721 = vadd.f32 0.0, %v720
  %v722 = vpop.f32.mrf.mxu0
  %v723 = vadd.f32 0.0, %v722
  %724 = vdwg.mxu0
  %725 = vmatprep.subr.mxu0 %v88
  %726 = vmatpush1.msra.mxu0 %v87
  %727 = vmatprep.subr.mxu0 %v84
  %728 = vmatpush1.msra.mxu0 %v83
  %729 = vmatprep.subr.mxu0 %v80
  %730 = vmatpush1.msra.mxu0 %v79
  %731 = vmatprep.subr.mxu0 %v76
  %732 = vmatpush1.msra.mxu0 %v75
  %733 = vmatprep.subr.mxu0 %v72
  %734 = vmatpush1.msra.mxu0 %v71
  %735 = vmatprep.subr.mxu0 %v68
  %736 = vmatpush1.msra.mxu0 %v67
  %737 = vmatprep.subr.mxu0 %v64
  %738 = vmatpush1.msra.mxu0 %v63
  %739 = vmatprep.subr.mxu0 %v60
  %740 = vmatpush1.msra.mxu0 %v59
  %741 = vmatprep.subr.mxu0 %v56
  %742 = vmatpush1.msra.mxu0 %v55
  %743 = vmatprep.subr.mxu0 %v52
  %744 = vmatpush1.msra.mxu0 %v51
  %745 = vmatprep.subr.mxu0 %v48
  %746 = vmatpush1.msra.mxu0 %v47
  %747 = vmatprep.subr.mxu0 %v44
  %748 = vmatpush1.msra.mxu0 %v43
  %749 = vmatprep.subr.mxu0 %v40
  %750 = vmatpush1.msra.mxu0 %v39
  %751 = vmatprep.subr.mxu0 %v36
  %752 = vmatpush1.msra.mxu0 %v35
  %753 = vmatprep.subr.mxu0 %v32
  %754 = vmatpush1.msra.mxu0 %v31
  %755 = vmatprep.subr.mxu0 %v28
  %756 = vmatpush1.msra.mxu0 %v27
  %757 = vmatprep.subr.mxu0 0.0
  %758 = vmatpush2.msra.mxu0 0.0
  %759 = vmatprep.subr.mxu0 0.0
  %760 = vmatpush2.msra.mxu0 0.0
  %761 = vmatprep.subr.mxu0 0.0
  %762 = vmatpush2.msra.mxu0 0.0
  %763 = vmatprep.subr.mxu0 0.0
  %764 = vmatpush2.msra.mxu0 0.0
  %765 = vmatprep.subr.mxu0 0.0
  %766 = vmatpush2.msra.mxu0 0.0
  %767 = vmatprep.subr.mxu0 0.0
  %768 = vmatpush2.msra.mxu0 0.0
  %769 = vmatprep.subr.mxu0 0.0
  %770 = vmatpush2.msra.mxu0 0.0
  %771 = vmatprep.subr.mxu0 0.0
  %772 = vmatpush2.msra.mxu0 0.0
  %773 = vmatprep.subr.mxu0 0.0
  %774 = vmatpush2.msra.mxu0 0.0
  %775 = vmatprep.subr.mxu0 0.0
  %776 = vmatpush2.msra.mxu0 0.0
  %777 = vmatprep.subr.mxu0 0.0
  %778 = vmatpush2.msra.mxu0 0.0
  %779 = vmatprep.subr.mxu0 0.0
  %780 = vmatpush2.msra.mxu0 0.0
  %781 = vmatprep.subr.mxu0 0.0
  %782 = vmatpush2.msra.mxu0 0.0
  %783 = vmatprep.subr.mxu0 0.0
  %784 = vmatpush2.msra.mxu0 0.0
  %785 = vmatprep.subr.mxu0 0.0
  %786 = vmatpush2.msra.mxu0 0.0
  %787 = vmatprep.subr.mxu0 0.0
  %788 = vmatpush2.msra.mxu0 0.0
  %789 = vmatprep.mubr.f32.mxu0 0.0
  %790 = vmatmul.mubr.f32.gmra.mxu0 %v653
  %v791 = vpop.f32.mrf.mxu0
  %v792 = vadd.f32 0.0, %v791
  %v793 = vpop.f32.mrf.mxu0
  %v794 = vadd.f32 0.0, %v793
  %795 = vdwg.mxu0
  %v796 = vadd.f32 %v649, %v721
  %v797 = vadd.f32 %v650, %v723
  %v798 = vadd.f32 %v651, %v792
  %v799 = vadd.f32 %v652, %v794
  %v800 = vtanh.pop %v796
  %v801 = vtanh.pop %v797
  %v802 = vtanh.pop %v798
  %v803 = vtanh.pop %v799
  %v804 = vmul.f32 %v250, %v800
  %v805 = vmul.f32 %v254, %v801
  %v806 = vmul.f32 %v258, %v802
  %v807 = vmul.f32 %v262, %v803
  %v808 = vadd.f32 %v804, %v275
  %v809 = vadd.f32 %v805, %v279
  %v810 = vadd.f32 %v806, %v283
  %v811 = vadd.f32 %v807, %v287
  %v812 = vld [vmem:[#allocation3] sm:$0xff]
  %v813 = vmul.f32 %v809, %v812
  %v814 = vmul.f32 %v808, %v810
  %v815 = vadd.f32 %v813, %v814
  %v816 = vtanh.pop %v815
  %v817 = vmul.f32 %v811, %v816
  %818 = vst [vmem:[#allocation2] sm:$0xff] %v817
  %819 = vst [vmem:[#allocation3] sm:$0xff] %v815
  %s820 = scalar_lea.vmem %s0, 128
  %v821 = vld [vmem:[%s820] sm:$0xff]
  %v822 = vld [vmem:[%s820 + $0x8] sm:$0xff]
  %v823 = vld [vmem:[%s820 + $0x10] sm:$0xff]
  %v824 = vld [vmem:[%s820 + $0x18] sm:$0xff]
  %v825 = vld [vmem:[#allocation2] sm:$0xff]
  %826 = vmatprep.subr.mxu0 %v86
  %827 = vmatpush1.msra.mxu0 %v85
  %828 = vmatprep.subr.mxu0 %v82
  %829 = vmatpush1.msra.mxu0 %v81
  %830 = vmatprep.subr.mxu0 %v78
  %831 = vmatpush1.msra.mxu0 %v77
  %832 = vmatprep.subr.mxu0 %v74
  %833 = vmatpush1.msra.mxu0 %v73
  %834 = vmatprep.subr.mxu0 %v70
  %835 = vmatpush1.msra.mxu0 %v69
  %836 = vmatprep.subr.mxu0 %v66
  %837 = vmatpush1.msra.mxu0 %v65
  %838 = vmatprep.subr.mxu0 %v62
  %839 = vmatpush1.msra.mxu0 %v61
  %840 = vmatprep.subr.mxu0 %v58
  %841 = vmatpush1.msra.mxu0 %v57
  %842 = vmatprep.subr.mxu0 %v54
  %843 = vmatpush1.msra.mxu0 %v53
  %844 = vmatprep.subr.mxu0 %v50
  %845 = vmatpush1.msra.mxu0 %v49
  %846 = vmatprep.subr.mxu0 %v46
  %847 = vmatpush1.msra.mxu0 %v45
  %848 = vmatprep.subr.mxu0 %v42
  %849 = vmatpush1.msra.mxu0 %v41
  %850 = vmatprep.subr.mxu0 %v38
  %851 = vmatpush1.msra.mxu0 %v37
  %852 = vmatprep.subr.mxu0 %v34
  %853 = vmatpush1.msra.mxu0 %v33
  %854 = vmatprep.subr.mxu0 %v30
  %855 = vmatpush1.msra.mxu0 %v29
  %856 = vmatprep.subr.mxu0 %v26
  %857 = vmatpush1.msra.mxu0 %v25
  %858 = vmatprep.subr.mxu0 0.0
  %859 = vmatpush2.msra.mxu0 0.0
  %860 = vmatprep.subr.mxu0 0.0
  %861 = vmatpush2.msra.mxu0 0.0
  %862 = vmatprep.subr.mxu0 0.0
  %863 = vmatpush2.msra.mxu0 0.0
  %864 = vmatprep.subr.mxu0 0.0
  %865 = vmatpush2.msra.mxu0 0.0
  %866 = vmatprep.subr.mxu0 0.0
  %867 = vmatpush2.msra.mxu0 0.0
  %868 = vmatprep.subr.mxu0 0.0
  %869 = vmatpush2.msra.mxu0 0.0
  %870 = vmatprep.subr.mxu0 0.0
  %871 = vmatpush2.msra.mxu0 0.0
  %872 = vmatprep.subr.mxu0 0.0
  %873 = vmatpush2.msra.mxu0 0.0
  %874 = vmatprep.subr.mxu0 0.0
  %875 = vmatpush2.msra.mxu0 0.0
  %876 = vmatprep.subr.mxu0 0.0
  %877 = vmatpush2.msra.mxu0 0.0
  %878 = vmatprep.subr.mxu0 0.0
  %879 = vmatpush2.msra.mxu0 0.0
  %880 = vmatprep.subr.mxu0 0.0
  %881 = vmatpush2.msra.mxu0 0.0
  %882 = vmatprep.subr.mxu0 0.0
  %883 = vmatpush2.msra.mxu0 0.0
  %884 = vmatprep.subr.mxu0 0.0
  %885 = vmatpush2.msra.mxu0 0.0
  %886 = vmatprep.subr.mxu0 0.0
  %887 = vmatpush2.msra.mxu0 0.0
  %888 = vmatprep.subr.mxu0 0.0
  %889 = vmatpush2.msra.mxu0 0.0
  %890 = vmatprep.mubr.f32.mxu0 0.0
  %891 = vmatmul.mubr.f32.gmra.mxu0 %v825
  %v892 = vpop.f32.mrf.mxu0
  %v893 = vadd.f32 0.0, %v892
  %v894 = vpop.f32.mrf.mxu0
  %v895 = vadd.f32 0.0, %v894
  %896 = vdwg.mxu0
  %897 = vmatprep.subr.mxu0 %v88
  %898 = vmatpush1.msra.mxu0 %v87
  %899 = vmatprep.subr.mxu0 %v84
  %900 = vmatpush1.msra.mxu0 %v83
  %901 = vmatprep.subr.mxu0 %v80
  %902 = vmatpush1.msra.mxu0 %v79
  %903 = vmatprep.subr.mxu0 %v76
  %904 = vmatpush1.msra.mxu0 %v75
  %905 = vmatprep.subr.mxu0 %v72
  %906 = vmatpush1.msra.mxu0 %v71
  %907 = vmatprep.subr.mxu0 %v68
  %908 = vmatpush1.msra.mxu0 %v67
  %909 = vmatprep.subr.mxu0 %v64
  %910 = vmatpush1.msra.mxu0 %v63
  %911 = vmatprep.subr.mxu0 %v60
  %912 = vmatpush1.msra.mxu0 %v59
  %913 = vmatprep.subr.mxu0 %v56
  %914 = vmatpush1.msra.mxu0 %v55
  %915 = vmatprep.subr.mxu0 %v52
  %916 = vmatpush1.msra.mxu0 %v51
  %917 = vmatprep.subr.mxu0 %v48
  %918 = vmatpush1.msra.mxu0 %v47
  %919 = vmatprep.subr.mxu0 %v44
  %920 = vmatpush1.msra.mxu0 %v43
  %921 = vmatprep.subr.mxu0 %v40
  %922 = vmatpush1.msra.mxu0 %v39
  %923 = vmatprep.subr.mxu0 %v36
  %924 = vmatpush1.msra.mxu0 %v35
  %925 = vmatprep.subr.mxu0 %v32
  %926 = vmatpush1.msra.mxu0 %v31
  %927 = vmatprep.subr.mxu0 %v28
  %928 = vmatpush1.msra.mxu0 %v27
  %929 = vmatprep.subr.mxu0 0.0
  %930 = vmatpush2.msra.mxu0 0.0
  %931 = vmatprep.subr.mxu0 0.0
  %932 = vmatpush2.msra.mxu0 0.0
  %933 = vmatprep.subr.mxu0 0.0
  %934 = vmatpush2.msra.mxu0 0.0
  %935 = vmatprep.subr.mxu0 0.0
  %936 = vmatpush2.msra.mxu0 0.0
  %937 = vmatprep.subr.mxu0 0.0
  %938 = vmatpush2.msra.mxu0 0.0
  %939 = vmatprep.subr.mxu0 0.0
  %940 = vmatpush2.msra.mxu0 0.0
  %941 = vmatprep.subr.mxu0 0.0
  %942 = vmatpush2.msra.mxu0 0.0
  %943 = vmatprep.subr.mxu0 0.0
  %944 = vmatpush2.msra.mxu0 0.0
  %945 = vmatprep.subr.mxu0 0.0
  %946 = vmatpush2.msra.mxu0 0.0
  %947 = vmatprep.subr.mxu0 0.0
  %948 = vmatpush2.msra.mxu0 0.0
  %949 = vmatprep.subr.mxu0 0.0
  %950 = vmatpush2.msra.mxu0 0.0
  %951 = vmatprep.subr.mxu0 0.0
  %952 = vmatpush2.msra.mxu0 0.0
  %953 = vmatprep.subr.mxu0 0.0
  %954 = vmatpush2.msra.mxu0 0.0
  %955 = vmatprep.subr.mxu0 0.0
  %956 = vmatpush2.msra.mxu0 0.0
  %957 = vmatprep.subr.mxu0 0.0
  %958 = vmatpush2.msra.mxu0 0.0
  %959 = vmatprep.subr.mxu0 0.0
  %960 = vmatpush2.msra.mxu0 0.0
  %961 = vmatprep.mubr.f32.mxu0 0.0
  %962 = vmatmul.mubr.f32.gmra.mxu0 %v825
  %v963 = vpop.f32.mrf.mxu0
  %v964 = vadd.f32 0.0, %v963
  %v965 = vpop.f32.mrf.mxu0
  %v966 = vadd.f32 0.0, %v965
  %967 = vdwg.mxu0
  %v968 = vadd.f32 %v821, %v893
  %v969 = vadd.f32 %v822, %v895
  %v970 = vadd.f32 %v823, %v964
  %v971 = vadd.f32 %v824, %v966
  %v972 = vtanh.pop %v968
  %v973 = vtanh.pop %v969
  %v974 = vtanh.pop %v970
  %v975 = vtanh.pop %v971
  %v976 = vmul.f32 %v250, %v972
  %v977 = vmul.f32 %v254, %v973
  %v978 = vmul.f32 %v258, %v974
  %v979 = vmul.f32 %v262, %v975
  %v980 = vadd.f32 %v976, %v275
  %v981 = vadd.f32 %v977, %v279
  %v982 = vadd.f32 %v978, %v283
  %v983 = vadd.f32 %v979, %v287
  %v984 = vld [vmem:[#allocation3] sm:$0xff]
  %v985 = vmul.f32 %v981, %v984
  %v986 = vmul.f32 %v980, %v982
  %v987 = vadd.f32 %v985, %v986
  %v988 = vtanh.pop %v987
  %v989 = vmul.f32 %v983, %v988
  %990 = vst [vmem:[#allocation2] sm:$0xff] %v989
  %991 = vst [vmem:[#allocation3] sm:$0xff] %v987
  %s992 = scalar_lea.vmem %s0, 160
  %v993 = vld [vmem:[%s992] sm:$0xff]
  %v994 = vld [vmem:[%s992 + $0x8] sm:$0xff]
  %v995 = vld [vmem:[%s992 + $0x10] sm:$0xff]
  %v996 = vld [vmem:[%s992 + $0x18] sm:$0xff]
  %v997 = vld [vmem:[#allocation2] sm:$0xff]
  %998 = vmatprep.subr.mxu0 %v86
  %999 = vmatpush1.msra.mxu0 %v85
  %1000 = vmatprep.subr.mxu0 %v82
  %1001 = vmatpush1.msra.mxu0 %v81
  %1002 = vmatprep.subr.mxu0 %v78
  %1003 = vmatpush1.msra.mxu0 %v77
  %1004 = vmatprep.subr.mxu0 %v74
  %1005 = vmatpush1.msra.mxu0 %v73
  %1006 = vmatprep.subr.mxu0 %v70
  %1007 = vmatpush1.msra.mxu0 %v69
  %1008 = vmatprep.subr.mxu0 %v66
  %1009 = vmatpush1.msra.mxu0 %v65
  %1010 = vmatprep.subr.mxu0 %v62
  %1011 = vmatpush1.msra.mxu0 %v61
  %1012 = vmatprep.subr.mxu0 %v58
  %1013 = vmatpush1.msra.mxu0 %v57
  %1014 = vmatprep.subr.mxu0 %v54
  %1015 = vmatpush1.msra.mxu0 %v53
  %1016 = vmatprep.subr.mxu0 %v50
  %1017 = vmatpush1.msra.mxu0 %v49
  %1018 = vmatprep.subr.mxu0 %v46
  %1019 = vmatpush1.msra.mxu0 %v45
  %1020 = vmatprep.subr.mxu0 %v42
  %1021 = vmatpush1.msra.mxu0 %v41
  %1022 = vmatprep.subr.mxu0 %v38
  %1023 = vmatpush1.msra.mxu0 %v37
  %1024 = vmatprep.subr.mxu0 %v34
  %1025 = vmatpush1.msra.mxu0 %v33
  %1026 = vmatprep.subr.mxu0 %v30
  %1027 = vmatpush1.msra.mxu0 %v29
  %1028 = vmatprep.subr.mxu0 %v26
  %1029 = vmatpush1.msra.mxu0 %v25
  %1030 = vmatprep.subr.mxu0 0.0
  %1031 = vmatpush2.msra.mxu0 0.0
  %1032 = vmatprep.subr.mxu0 0.0
  %1033 = vmatpush2.msra.mxu0 0.0
  %1034 = vmatprep.subr.mxu0 0.0
  %1035 = vmatpush2.msra.mxu0 0.0
  %1036 = vmatprep.subr.mxu0 0.0
  %1037 = vmatpush2.msra.mxu0 0.0
  %1038 = vmatprep.subr.mxu0 0.0
  %1039 = vmatpush2.msra.mxu0 0.0
  %1040 = vmatprep.subr.mxu0 0.0
  %1041 = vmatpush2.msra.mxu0 0.0
  %1042 = vmatprep.subr.mxu0 0.0
  %1043 = vmatpush2.msra.mxu0 0.0
  %1044 = vmatprep.subr.mxu0 0.0
  %1045 = vmatpush2.msra.mxu0 0.0
  %1046 = vmatprep.subr.mxu0 0.0
  %1047 = vmatpush2.msra.mxu0 0.0
  %1048 = vmatprep.subr.mxu0 0.0
  %1049 = vmatpush2.msra.mxu0 0.0
  %1050 = vmatprep.subr.mxu0 0.0
  %1051 = vmatpush2.msra.mxu0 0.0
  %1052 = vmatprep.subr.mxu0 0.0
  %1053 = vmatpush2.msra.mxu0 0.0
  %1054 = vmatprep.subr.mxu0 0.0
  %1055 = vmatpush2.msra.mxu0 0.0
  %1056 = vmatprep.subr.mxu0 0.0
  %1057 = vmatpush2.msra.mxu0 0.0
  %1058 = vmatprep.subr.mxu0 0.0
  %1059 = vmatpush2.msra.mxu0 0.0
  %1060 = vmatprep.subr.mxu0 0.0
  %1061 = vmatpush2.msra.mxu0 0.0
  %1062 = vmatprep.mubr.f32.mxu0 0.0
  %1063 = vmatmul.mubr.f32.gmra.mxu0 %v997
  %v1064 = vpop.f32.mrf.mxu0
  %v1065 = vadd.f32 0.0, %v1064
  %v1066 = vpop.f32.mrf.mxu0
  %v1067 = vadd.f32 0.0, %v1066
  %1068 = vdwg.mxu0
  %1069 = vmatprep.subr.mxu0 %v88
  %1070 = vmatpush1.msra.mxu0 %v87
  %1071 = vmatprep.subr.mxu0 %v84
  %1072 = vmatpush1.msra.mxu0 %v83
  %1073 = vmatprep.subr.mxu0 %v80
  %1074 = vmatpush1.msra.mxu0 %v79
  %1075 = vmatprep.subr.mxu0 %v76
  %1076 = vmatpush1.msra.mxu0 %v75
  %1077 = vmatprep.subr.mxu0 %v72
  %1078 = vmatpush1.msra.mxu0 %v71
  %1079 = vmatprep.subr.mxu0 %v68
  %1080 = vmatpush1.msra.mxu0 %v67
  %1081 = vmatprep.subr.mxu0 %v64
  %1082 = vmatpush1.msra.mxu0 %v63
  %1083 = vmatprep.subr.mxu0 %v60
  %1084 = vmatpush1.msra.mxu0 %v59
  %1085 = vmatprep.subr.mxu0 %v56
  %1086 = vmatpush1.msra.mxu0 %v55
  %1087 = vmatprep.subr.mxu0 %v52
  %1088 = vmatpush1.msra.mxu0 %v51
  %1089 = vmatprep.subr.mxu0 %v48
  %1090 = vmatpush1.msra.mxu0 %v47
  %1091 = vmatprep.subr.mxu0 %v44
  %1092 = vmatpush1.msra.mxu0 %v43
  %1093 = vmatprep.subr.mxu0 %v40
  %1094 = vmatpush1.msra.mxu0 %v39
  %1095 = vmatprep.subr.mxu0 %v36
  %1096 = vmatpush1.msra.mxu0 %v35
  %1097 = vmatprep.subr.mxu0 %v32
  %1098 = vmatpush1.msra.mxu0 %v31
  %1099 = vmatprep.subr.mxu0 %v28
  %1100 = vmatpush1.msra.mxu0 %v27
  %1101 = vmatprep.subr.mxu0 0.0
  %1102 = vmatpush2.msra.mxu0 0.0
  %1103 = vmatprep.subr.mxu0 0.0
  %1104 = vmatpush2.msra.mxu0 0.0
  %1105 = vmatprep.subr.mxu0 0.0
  %1106 = vmatpush2.msra.mxu0 0.0
  %1107 = vmatprep.subr.mxu0 0.0
  %1108 = vmatpush2.msra.mxu0 0.0
  %1109 = vmatprep.subr.mxu0 0.0
  %1110 = vmatpush2.msra.mxu0 0.0
  %1111 = vmatprep.subr.mxu0 0.0
  %1112 = vmatpush2.msra.mxu0 0.0
  %1113 = vmatprep.subr.mxu0 0.0
  %1114 = vmatpush2.msra.mxu0 0.0
  %1115 = vmatprep.subr.mxu0 0.0
  %1116 = vmatpush2.msra.mxu0 0.0
  %1117 = vmatprep.subr.mxu0 0.0
  %1118 = vmatpush2.msra.mxu0 0.0
  %1119 = vmatprep.subr.mxu0 0.0
  %1120 = vmatpush2.msra.mxu0 0.0
  %1121 = vmatprep.subr.mxu0 0.0
  %1122 = vmatpush2.msra.mxu0 0.0
  %1123 = vmatprep.subr.mxu0 0.0
  %1124 = vmatpush2.msra.mxu0 0.0
  %1125 = vmatprep.subr.mxu0 0.0
  %1126 = vmatpush2.msra.mxu0 0.0
  %1127 = vmatprep.subr.mxu0 0.0
  %1128 = vmatpush2.msra.mxu0 0.0
  %1129 = vmatprep.subr.mxu0 0.0
  %1130 = vmatpush2.msra.mxu0 0.0
  %1131 = vmatprep.subr.mxu0 0.0
  %1132 = vmatpush2.msra.mxu0 0.0
  %1133 = vmatprep.mubr.f32.mxu0 0.0
  %1134 = vmatmul.mubr.f32.gmra.mxu0 %v997
  %v1135 = vpop.f32.mrf.mxu0
  %v1136 = vadd.f32 0.0, %v1135
  %v1137 = vpop.f32.mrf.mxu0
  %v1138 = vadd.f32 0.0, %v1137
  %1139 = vdwg.mxu0
  %v1140 = vadd.f32 %v993, %v1065
  %v1141 = vadd.f32 %v994, %v1067
  %v1142 = vadd.f32 %v995, %v1136
  %v1143 = vadd.f32 %v996, %v1138
  %v1144 = vtanh.pop %v1140
  %v1145 = vtanh.pop %v1141
  %v1146 = vtanh.pop %v1142
  %v1147 = vtanh.pop %v1143
  %v1148 = vmul.f32 %v250, %v1144
  %v1149 = vmul.f32 %v254, %v1145
  %v1150 = vmul.f32 %v258, %v1146
  %v1151 = vmul.f32 %v262, %v1147
  %v1152 = vadd.f32 %v1148, %v275
  %v1153 = vadd.f32 %v1149, %v279
  %v1154 = vadd.f32 %v1150, %v283
  %v1155 = vadd.f32 %v1151, %v287
  %v1156 = vld [vmem:[#allocation3] sm:$0xff]
  %v1157 = vmul.f32 %v1153, %v1156
  %v1158 = vmul.f32 %v1152, %v1154
  %v1159 = vadd.f32 %v1157, %v1158
  %v1160 = vtanh.pop %v1159
  %v1161 = vmul.f32 %v1155, %v1160
  %1162 = vst [vmem:[#allocation2] sm:$0xff] %v1161
  %1163 = vst [vmem:[#allocation3] sm:$0xff] %v1159
  %s1164 = scalar_lea.vmem %s0, 192
  %v1165 = vld [vmem:[%s1164] sm:$0xff]
  %v1166 = vld [vmem:[%s1164 + $0x8] sm:$0xff]
  %v1167 = vld [vmem:[%s1164 + $0x10] sm:$0xff]
  %v1168 = vld [vmem:[%s1164 + $0x18] sm:$0xff]
  %v1169 = vld [vmem:[#allocation2] sm:$0xff]
  %1170 = vmatprep.subr.mxu0 %v86
  %1171 = vmatpush1.msra.mxu0 %v85
  %1172 = vmatprep.subr.mxu0 %v82
  %1173 = vmatpush1.msra.mxu0 %v81
  %1174 = vmatprep.subr.mxu0 %v78
  %1175 = vmatpush1.msra.mxu0 %v77
  %1176 = vmatprep.subr.mxu0 %v74
  %1177 = vmatpush1.msra.mxu0 %v73
  %1178 = vmatprep.subr.mxu0 %v70
  %1179 = vmatpush1.msra.mxu0 %v69
  %1180 = vmatprep.subr.mxu0 %v66
  %1181 = vmatpush1.msra.mxu0 %v65
  %1182 = vmatprep.subr.mxu0 %v62
  %1183 = vmatpush1.msra.mxu0 %v61
  %1184 = vmatprep.subr.mxu0 %v58
  %1185 = vmatpush1.msra.mxu0 %v57
  %1186 = vmatprep.subr.mxu0 %v54
  %1187 = vmatpush1.msra.mxu0 %v53
  %1188 = vmatprep.subr.mxu0 %v50
  %1189 = vmatpush1.msra.mxu0 %v49
  %1190 = vmatprep.subr.mxu0 %v46
  %1191 = vmatpush1.msra.mxu0 %v45
  %1192 = vmatprep.subr.mxu0 %v42
  %1193 = vmatpush1.msra.mxu0 %v41
  %1194 = vmatprep.subr.mxu0 %v38
  %1195 = vmatpush1.msra.mxu0 %v37
  %1196 = vmatprep.subr.mxu0 %v34
  %1197 = vmatpush1.msra.mxu0 %v33
  %1198 = vmatprep.subr.mxu0 %v30
  %1199 = vmatpush1.msra.mxu0 %v29
  %1200 = vmatprep.subr.mxu0 %v26
  %1201 = vmatpush1.msra.mxu0 %v25
  %1202 = vmatprep.subr.mxu0 0.0
  %1203 = vmatpush2.msra.mxu0 0.0
  %1204 = vmatprep.subr.mxu0 0.0
  %1205 = vmatpush2.msra.mxu0 0.0
  %1206 = vmatprep.subr.mxu0 0.0
  %1207 = vmatpush2.msra.mxu0 0.0
  %1208 = vmatprep.subr.mxu0 0.0
  %1209 = vmatpush2.msra.mxu0 0.0
  %1210 = vmatprep.subr.mxu0 0.0
  %1211 = vmatpush2.msra.mxu0 0.0
  %1212 = vmatprep.subr.mxu0 0.0
  %1213 = vmatpush2.msra.mxu0 0.0
  %1214 = vmatprep.subr.mxu0 0.0
  %1215 = vmatpush2.msra.mxu0 0.0
  %1216 = vmatprep.subr.mxu0 0.0
  %1217 = vmatpush2.msra.mxu0 0.0
  %1218 = vmatprep.subr.mxu0 0.0
  %1219 = vmatpush2.msra.mxu0 0.0
  %1220 = vmatprep.subr.mxu0 0.0
  %1221 = vmatpush2.msra.mxu0 0.0
  %1222 = vmatprep.subr.mxu0 0.0
  %1223 = vmatpush2.msra.mxu0 0.0
  %1224 = vmatprep.subr.mxu0 0.0
  %1225 = vmatpush2.msra.mxu0 0.0
  %1226 = vmatprep.subr.mxu0 0.0
  %1227 = vmatpush2.msra.mxu0 0.0
  %1228 = vmatprep.subr.mxu0 0.0
  %1229 = vmatpush2.msra.mxu0 0.0
  %1230 = vmatprep.subr.mxu0 0.0
  %1231 = vmatpush2.msra.mxu0 0.0
  %1232 = vmatprep.subr.mxu0 0.0
  %1233 = vmatpush2.msra.mxu0 0.0
  %1234 = vmatprep.mubr.f32.mxu0 0.0
  %1235 = vmatmul.mubr.f32.gmra.mxu0 %v1169
  %v1236 = vpop.f32.mrf.mxu0
  %v1237 = vadd.f32 0.0, %v1236
  %v1238 = vpop.f32.mrf.mxu0
  %v1239 = vadd.f32 0.0, %v1238
  %1240 = vdwg.mxu0
  %1241 = vmatprep.subr.mxu0 %v88
  %1242 = vmatpush1.msra.mxu0 %v87
  %1243 = vmatprep.subr.mxu0 %v84
  %1244 = vmatpush1.msra.mxu0 %v83
  %1245 = vmatprep.subr.mxu0 %v80
  %1246 = vmatpush1.msra.mxu0 %v79
  %1247 = vmatprep.subr.mxu0 %v76
  %1248 = vmatpush1.msra.mxu0 %v75
  %1249 = vmatprep.subr.mxu0 %v72
  %1250 = vmatpush1.msra.mxu0 %v71
  %1251 = vmatprep.subr.mxu0 %v68
  %1252 = vmatpush1.msra.mxu0 %v67
  %1253 = vmatprep.subr.mxu0 %v64
  %1254 = vmatpush1.msra.mxu0 %v63
  %1255 = vmatprep.subr.mxu0 %v60
  %1256 = vmatpush1.msra.mxu0 %v59
  %1257 = vmatprep.subr.mxu0 %v56
  %1258 = vmatpush1.msra.mxu0 %v55
  %1259 = vmatprep.subr.mxu0 %v52
  %1260 = vmatpush1.msra.mxu0 %v51
  %1261 = vmatprep.subr.mxu0 %v48
  %1262 = vmatpush1.msra.mxu0 %v47
  %1263 = vmatprep.subr.mxu0 %v44
  %1264 = vmatpush1.msra.mxu0 %v43
  %1265 = vmatprep.subr.mxu0 %v40
  %1266 = vmatpush1.msra.mxu0 %v39
  %1267 = vmatprep.subr.mxu0 %v36
  %1268 = vmatpush1.msra.mxu0 %v35
  %1269 = vmatprep.subr.mxu0 %v32
  %1270 = vmatpush1.msra.mxu0 %v31
  %1271 = vmatprep.subr.mxu0 %v28
  %1272 = vmatpush1.msra.mxu0 %v27
  %1273 = vmatprep.subr.mxu0 0.0
  %1274 = vmatpush2.msra.mxu0 0.0
  %1275 = vmatprep.subr.mxu0 0.0
  %1276 = vmatpush2.msra.mxu0 0.0
  %1277 = vmatprep.subr.mxu0 0.0
  %1278 = vmatpush2.msra.mxu0 0.0
  %1279 = vmatprep.subr.mxu0 0.0
  %1280 = vmatpush2.msra.mxu0 0.0
  %1281 = vmatprep.subr.mxu0 0.0
  %1282 = vmatpush2.msra.mxu0 0.0
  %1283 = vmatprep.subr.mxu0 0.0
  %1284 = vmatpush2.msra.mxu0 0.0
  %1285 = vmatprep.subr.mxu0 0.0
  %1286 = vmatpush2.msra.mxu0 0.0
  %1287 = vmatprep.subr.mxu0 0.0
  %1288 = vmatpush2.msra.mxu0 0.0
  %1289 = vmatprep.subr.mxu0 0.0
  %1290 = vmatpush2.msra.mxu0 0.0
  %1291 = vmatprep.subr.mxu0 0.0
  %1292 = vmatpush2.msra.mxu0 0.0
  %1293 = vmatprep.subr.mxu0 0.0
  %1294 = vmatpush2.msra.mxu0 0.0
  %1295 = vmatprep.subr.mxu0 0.0
  %1296 = vmatpush2.msra.mxu0 0.0
  %1297 = vmatprep.subr.mxu0 0.0
  %1298 = vmatpush2.msra.mxu0 0.0
  %1299 = vmatprep.subr.mxu0 0.0
  %1300 = vmatpush2.msra.mxu0 0.0
  %1301 = vmatprep.subr.mxu0 0.0
  %1302 = vmatpush2.msra.mxu0 0.0
  %1303 = vmatprep.subr.mxu0 0.0
  %1304 = vmatpush2.msra.mxu0 0.0
  %1305 = vmatprep.mubr.f32.mxu0 0.0
  %1306 = vmatmul.mubr.f32.gmra.mxu0 %v1169
  %v1307 = vpop.f32.mrf.mxu0
  %v1308 = vadd.f32 0.0, %v1307
  %v1309 = vpop.f32.mrf.mxu0
  %v1310 = vadd.f32 0.0, %v1309
  %1311 = vdwg.mxu0
  %v1312 = vadd.f32 %v1165, %v1237
  %v1313 = vadd.f32 %v1166, %v1239
  %v1314 = vadd.f32 %v1167, %v1308
  %v1315 = vadd.f32 %v1168, %v1310
  %v1316 = vtanh.pop %v1312
  %v1317 = vtanh.pop %v1313
  %v1318 = vtanh.pop %v1314
  %v1319 = vtanh.pop %v1315
  %v1320 = vmul.f32 %v250, %v1316
  %v1321 = vmul.f32 %v254, %v1317
  %v1322 = vmul.f32 %v258, %v1318
  %v1323 = vmul.f32 %v262, %v1319
  %v1324 = vadd.f32 %v1320, %v275
  %v1325 = vadd.f32 %v1321, %v279
  %v1326 = vadd.f32 %v1322, %v283
  %v1327 = vadd.f32 %v1323, %v287
  %v1328 = vld [vmem:[#allocation3] sm:$0xff]
  %v1329 = vmul.f32 %v1325, %v1328
  %v1330 = vmul.f32 %v1324, %v1326
  %v1331 = vadd.f32 %v1329, %v1330
  %v1332 = vtanh.pop %v1331
  %v1333 = vmul.f32 %v1327, %v1332
  %1334 = vst [vmem:[#allocation2] sm:$0xff] %v1333
  %1335 = vst [vmem:[#allocation3] sm:$0xff] %v1331
  %s1336 = scalar_lea.vmem %s0, 224
  %v1337 = vld [vmem:[%s1336] sm:$0xff]
  %v1338 = vld [vmem:[%s1336 + $0x8] sm:$0xff]
  %v1339 = vld [vmem:[%s1336 + $0x10] sm:$0xff]
  %v1340 = vld [vmem:[%s1336 + $0x18] sm:$0xff]
  %v1341 = vld [vmem:[#allocation2] sm:$0xff]
  %1342 = vmatprep.subr.mxu0 %v86
  %1343 = vmatpush1.msra.mxu0 %v85
  %1344 = vmatprep.subr.mxu0 %v82
  %1345 = vmatpush1.msra.mxu0 %v81
  %1346 = vmatprep.subr.mxu0 %v78
  %1347 = vmatpush1.msra.mxu0 %v77
  %1348 = vmatprep.subr.mxu0 %v74
  %1349 = vmatpush1.msra.mxu0 %v73
  %1350 = vmatprep.subr.mxu0 %v70
  %1351 = vmatpush1.msra.mxu0 %v69
  %1352 = vmatprep.subr.mxu0 %v66
  %1353 = vmatpush1.msra.mxu0 %v65
  %1354 = vmatprep.subr.mxu0 %v62
  %1355 = vmatpush1.msra.mxu0 %v61
  %1356 = vmatprep.subr.mxu0 %v58
  %1357 = vmatpush1.msra.mxu0 %v57
  %1358 = vmatprep.subr.mxu0 %v54
  %1359 = vmatpush1.msra.mxu0 %v53
  %1360 = vmatprep.subr.mxu0 %v50
  %1361 = vmatpush1.msra.mxu0 %v49
  %1362 = vmatprep.subr.mxu0 %v46
  %1363 = vmatpush1.msra.mxu0 %v45
  %1364 = vmatprep.subr.mxu0 %v42
  %1365 = vmatpush1.msra.mxu0 %v41
  %1366 = vmatprep.subr.mxu0 %v38
  %1367 = vmatpush1.msra.mxu0 %v37
  %1368 = vmatprep.subr.mxu0 %v34
  %1369 = vmatpush1.msra.mxu0 %v33
  %1370 = vmatprep.subr.mxu0 %v30
  %1371 = vmatpush1.msra.mxu0 %v29
  %1372 = vmatprep.subr.mxu0 %v26
  %1373 = vmatpush1.msra.mxu0 %v25
  %1374 = vmatprep.subr.mxu0 0.0
  %1375 = vmatpush2.msra.mxu0 0.0
  %1376 = vmatprep.subr.mxu0 0.0
  %1377 = vmatpush2.msra.mxu0 0.0
  %1378 = vmatprep.subr.mxu0 0.0
  %1379 = vmatpush2.msra.mxu0 0.0
  %1380 = vmatprep.subr.mxu0 0.0
  %1381 = vmatpush2.msra.mxu0 0.0
  %1382 = vmatprep.subr.mxu0 0.0
  %1383 = vmatpush2.msra.mxu0 0.0
  %1384 = vmatprep.subr.mxu0 0.0
  %1385 = vmatpush2.msra.mxu0 0.0
  %1386 = vmatprep.subr.mxu0 0.0
  %1387 = vmatpush2.msra.mxu0 0.0
  %1388 = vmatprep.subr.mxu0 0.0
  %1389 = vmatpush2.msra.mxu0 0.0
  %1390 = vmatprep.subr.mxu0 0.0
  %1391 = vmatpush2.msra.mxu0 0.0
  %1392 = vmatprep.subr.mxu0 0.0
  %1393 = vmatpush2.msra.mxu0 0.0
  %1394 = vmatprep.subr.mxu0 0.0
  %1395 = vmatpush2.msra.mxu0 0.0
  %1396 = vmatprep.subr.mxu0 0.0
  %1397 = vmatpush2.msra.mxu0 0.0
  %1398 = vmatprep.subr.mxu0 0.0
  %1399 = vmatpush2.msra.mxu0 0.0
  %1400 = vmatprep.subr.mxu0 0.0
  %1401 = vmatpush2.msra.mxu0 0.0
  %1402 = vmatprep.subr.mxu0 0.0
  %1403 = vmatpush2.msra.mxu0 0.0
  %1404 = vmatprep.subr.mxu0 0.0
  %1405 = vmatpush2.msra.mxu0 0.0
  %1406 = vmatprep.mubr.f32.mxu0 0.0
  %1407 = vmatmul.mubr.f32.gmra.mxu0 %v1341
  %v1408 = vpop.f32.mrf.mxu0
  %v1409 = vadd.f32 0.0, %v1408
  %v1410 = vpop.f32.mrf.mxu0
  %v1411 = vadd.f32 0.0, %v1410
  %1412 = vdwg.mxu0
  %1413 = vmatprep.subr.mxu0 %v88
  %1414 = vmatpush1.msra.mxu0 %v87
  %1415 = vmatprep.subr.mxu0 %v84
  %1416 = vmatpush1.msra.mxu0 %v83
  %1417 = vmatprep.subr.mxu0 %v80
  %1418 = vmatpush1.msra.mxu0 %v79
  %1419 = vmatprep.subr.mxu0 %v76
  %1420 = vmatpush1.msra.mxu0 %v75
  %1421 = vmatprep.subr.mxu0 %v72
  %1422 = vmatpush1.msra.mxu0 %v71
  %1423 = vmatprep.subr.mxu0 %v68
  %1424 = vmatpush1.msra.mxu0 %v67
  %1425 = vmatprep.subr.mxu0 %v64
  %1426 = vmatpush1.msra.mxu0 %v63
  %1427 = vmatprep.subr.mxu0 %v60
  %1428 = vmatpush1.msra.mxu0 %v59
  %1429 = vmatprep.subr.mxu0 %v56
  %1430 = vmatpush1.msra.mxu0 %v55
  %1431 = vmatprep.subr.mxu0 %v52
  %1432 = vmatpush1.msra.mxu0 %v51
  %1433 = vmatprep.subr.mxu0 %v48
  %1434 = vmatpush1.msra.mxu0 %v47
  %1435 = vmatprep.subr.mxu0 %v44
  %1436 = vmatpush1.msra.mxu0 %v43
  %1437 = vmatprep.subr.mxu0 %v40
  %1438 = vmatpush1.msra.mxu0 %v39
  %1439 = vmatprep.subr.mxu0 %v36
  %1440 = vmatpush1.msra.mxu0 %v35
  %1441 = vmatprep.subr.mxu0 %v32
  %1442 = vmatpush1.msra.mxu0 %v31
  %1443 = vmatprep.subr.mxu0 %v28
  %1444 = vmatpush1.msra.mxu0 %v27
  %1445 = vmatprep.subr.mxu0 0.0
  %1446 = vmatpush2.msra.mxu0 0.0
  %1447 = vmatprep.subr.mxu0 0.0
  %1448 = vmatpush2.msra.mxu0 0.0
  %1449 = vmatprep.subr.mxu0 0.0
  %1450 = vmatpush2.msra.mxu0 0.0
  %1451 = vmatprep.subr.mxu0 0.0
  %1452 = vmatpush2.msra.mxu0 0.0
  %1453 = vmatprep.subr.mxu0 0.0
  %1454 = vmatpush2.msra.mxu0 0.0
  %1455 = vmatprep.subr.mxu0 0.0
  %1456 = vmatpush2.msra.mxu0 0.0
  %1457 = vmatprep.subr.mxu0 0.0
  %1458 = vmatpush2.msra.mxu0 0.0
  %1459 = vmatprep.subr.mxu0 0.0
  %1460 = vmatpush2.msra.mxu0 0.0
  %1461 = vmatprep.subr.mxu0 0.0
  %1462 = vmatpush2.msra.mxu0 0.0
  %1463 = vmatprep.subr.mxu0 0.0
  %1464 = vmatpush2.msra.mxu0 0.0
  %1465 = vmatprep.subr.mxu0 0.0
  %1466 = vmatpush2.msra.mxu0 0.0
  %1467 = vmatprep.subr.mxu0 0.0
  %1468 = vmatpush2.msra.mxu0 0.0
  %1469 = vmatprep.subr.mxu0 0.0
  %1470 = vmatpush2.msra.mxu0 0.0
  %1471 = vmatprep.subr.mxu0 0.0
  %1472 = vmatpush2.msra.mxu0 0.0
  %1473 = vmatprep.subr.mxu0 0.0
  %1474 = vmatpush2.msra.mxu0 0.0
  %1475 = vmatprep.subr.mxu0 0.0
  %1476 = vmatpush2.msra.mxu0 0.0
  %1477 = vmatprep.mubr.f32.mxu0 0.0
  %1478 = vmatmul.mubr.f32.gmra.mxu0 %v1341
  %v1479 = vpop.f32.mrf.mxu0
  %v1480 = vadd.f32 0.0, %v1479
  %v1481 = vpop.f32.mrf.mxu0
  %v1482 = vadd.f32 0.0, %v1481
  %1483 = vdwg.mxu0
  %v1484 = vadd.f32 %v1337, %v1409
  %v1485 = vadd.f32 %v1338, %v1411
  %v1486 = vadd.f32 %v1339, %v1480
  %v1487 = vadd.f32 %v1340, %v1482
  %v1488 = vtanh.pop %v1484
  %v1489 = vtanh.pop %v1485
  %v1490 = vtanh.pop %v1486
  %v1491 = vtanh.pop %v1487
  %v1492 = vmul.f32 %v250, %v1488
  %v1493 = vmul.f32 %v254, %v1489
  %v1494 = vmul.f32 %v258, %v1490
  %v1495 = vmul.f32 %v262, %v1491
  %v1496 = vadd.f32 %v1492, %v275
  %v1497 = vadd.f32 %v1493, %v279
  %v1498 = vadd.f32 %v1494, %v283
  %v1499 = vadd.f32 %v1495, %v287
  %v1500 = vld [vmem:[#allocation3] sm:$0xff]
  %v1501 = vmul.f32 %v1497, %v1500
  %v1502 = vmul.f32 %v1496, %v1498
  %v1503 = vadd.f32 %v1501, %v1502
  %v1504 = vtanh.pop %v1503
  %v1505 = vmul.f32 %v1499, %v1504
  %1506 = vst [vmem:[#allocation2] sm:$0xff] %v1505
  %1507 = vst [vmem:[#allocation3] sm:$0xff] %v1503
  %v1508 = vld [vmem:[#allocation2] sm:$0xff]
  %v1509 = vld [vmem:[%s4] sm:$0x1]
  %v1510 = vld [vmem:[%s5] sm:$0x1]
  %1511 = vmatprep.subr.mxu0 0.0
  %1512 = vmatpush1.xpose.msra.mxu0 0.0
  %1513 = vmatprep.subr.mxu0 0.0
  %1514 = vmatpush1.xpose.msra.mxu0 0.0
  %1515 = vmatprep.subr.mxu0 0.0
  %1516 = vmatpush1.xpose.msra.mxu0 0.0
  %1517 = vmatprep.subr.mxu0 0.0
  %1518 = vmatpush1.xpose.msra.mxu0 0.0
  %1519 = vmatprep.subr.mxu0 0.0
  %1520 = vmatpush1.xpose.msra.mxu0 0.0
  %1521 = vmatprep.subr.mxu0 0.0
  %1522 = vmatpush1.xpose.msra.mxu0 0.0
  %1523 = vmatprep.subr.mxu0 0.0
  %1524 = vmatpush1.xpose.msra.mxu0 0.0
  %1525 = vmatprep.subr.mxu0 0.0
  %1526 = vmatpush1.xpose.msra.mxu0 0.0
  %1527 = vmatprep.subr.mxu0 0.0
  %1528 = vmatpush1.xpose.msra.mxu0 0.0
  %1529 = vmatprep.subr.mxu0 0.0
  %1530 = vmatpush1.xpose.msra.mxu0 0.0
  %1531 = vmatprep.subr.mxu0 0.0
  %1532 = vmatpush1.xpose.msra.mxu0 0.0
  %1533 = vmatprep.subr.mxu0 0.0
  %1534 = vmatpush1.xpose.msra.mxu0 0.0
  %1535 = vmatprep.subr.mxu0 0.0
  %1536 = vmatpush1.xpose.msra.mxu0 0.0
  %1537 = vmatprep.subr.mxu0 0.0
  %1538 = vmatpush1.xpose.msra.mxu0 0.0
  %1539 = vmatprep.subr.mxu0 0.0
  %1540 = vmatpush1.xpose.msra.mxu0 0.0
  %1541 = vmatprep.subr.mxu0 0.0
  %1542 = vmatpush1.xpose.msra.mxu0 %v1508
  %1543 = vmatprep.subr.mxu0 0.0
  %1544 = vmatpush2.xpose.msra.mxu0 0.0
  %1545 = vmatprep.subr.mxu0 0.0
  %1546 = vmatpush2.xpose.msra.mxu0 0.0
  %1547 = vmatprep.subr.mxu0 0.0
  %1548 = vmatpush2.xpose.msra.mxu0 0.0
  %1549 = vmatprep.subr.mxu0 0.0
  %1550 = vmatpush2.xpose.msra.mxu0 0.0
  %1551 = vmatprep.subr.mxu0 0.0
  %1552 = vmatpush2.xpose.msra.mxu0 0.0
  %1553 = vmatprep.subr.mxu0 0.0
  %1554 = vmatpush2.xpose.msra.mxu0 0.0
  %1555 = vmatprep.subr.mxu0 0.0
  %1556 = vmatpush2.xpose.msra.mxu0 0.0
  %1557 = vmatprep.subr.mxu0 0.0
  %1558 = vmatpush2.xpose.msra.mxu0 0.0
  %1559 = vmatprep.subr.mxu0 0.0
  %1560 = vmatpush2.xpose.msra.mxu0 0.0
  %1561 = vmatprep.subr.mxu0 0.0
  %1562 = vmatpush2.xpose.msra.mxu0 0.0
  %1563 = vmatprep.subr.mxu0 0.0
  %1564 = vmatpush2.xpose.msra.mxu0 0.0
  %1565 = vmatprep.subr.mxu0 0.0
  %1566 = vmatpush2.xpose.msra.mxu0 0.0
  %1567 = vmatprep.subr.mxu0 0.0
  %1568 = vmatpush2.xpose.msra.mxu0 0.0
  %1569 = vmatprep.subr.mxu0 0.0
  %1570 = vmatpush2.xpose.msra.mxu0 0.0
  %1571 = vmatprep.subr.mxu0 0.0
  %1572 = vmatpush2.xpose.msra.mxu0 0.0
  %1573 = vmatprep.subr.mxu0 0.0
  %1574 = vmatpush2.xpose.msra.mxu0 0.0
  %1575 = vmatprep.mubr.f32.mxu0 0.0
  %1576 = vmatmul.mubr.f32.gmra.mxu0 %v1509
  %v1577 = vpop.f32.mrf.mxu0
  %v1578 = vadd.f32 %v1510, %v1577
  %v1579 = vpop.f32.mrf.mxu0
  %1580 = vdwg.mxu0
  %vm1581 = vcmask 57344
  %1582 = vst.msk [vmem:[%s6] sm:$0x1] %vm1581, %v1578
  // Predicated region
  $region26: #{lstm_model_forward.1} parent=0 // pred_check
    _
  $region27: #{lstm_model_forward.1} parent=0 // pred_check_branch
    %1584 = sbr.rel (0) target = $region29
  $region28: #{lstm_model_forward.1} parent=0 // pred_region
    _
  $region29: #{lstm_model_forward.1} parent=0 // pred_fallthru
    _
  // Predicated region
  $region30: #{lstm_model_forward.1} parent=0 // pred_check
    _
  $region31: #{lstm_model_forward.1} parent=0 // pred_check_branch
    %1586 = sbr.rel (0) target = $region33
  $region32: #{lstm_model_forward.1} parent=0 // pred_region
    _
  $region33: #{lstm_model_forward.1} parent=0 // pred_fallthru
    _

</llo_original>
